<compile_context>
chip_gen: v7x
topology: tpu7x:2x2x1
jax: 0.10.0
libtpu: 0.0.40
codegen_flags: <defaults>
</compile_context>

<pallas_src>
import math

import numpy as np
import jax
import jax.numpy as jnp
from jax.experimental import pallas as pl
from jax.experimental.pallas import tpu as pltpu

# ---------------- small, deterministic config ----------------
B = 2          # batch
S = 8          # sequence length
H = 32         # hidden_size
NH = 4         # num_attention_heads
D = H // NH    # head_dim == kv_channels
HALF = D // 2  # RoPE half width
QH = NH * HALF # grouped q/k half-slab width == H // 2
FF = 32        # intermediate_size // 2
EPS = 1e-6     # layer_norm_epsilon
SCALE = math.sqrt(D)
M = B * S      # rows of the (B*S, H) activation slab


# ---------------- fused Pallas kernel ----------------
def qwen_block_kernel(x_ref, ln1w_ref, wattn_ref, battn_ref, wproj_ref,
                      ln2w_ref, w12_ref, wc_ref, cos_ref, sin_ref, mask_ref,
                      o_ref, ctx_ref):
    x = x_ref[...].astype(jnp.float32)                        # (M, H)

    # ---- ln_1 (RMSNorm) ----
    var1 = jnp.mean(x * x, axis=-1, keepdims=True)
    ln1 = x * jax.lax.rsqrt(var1 + EPS) * ln1w_ref[...]

    # ---- c_attn: one (M, 3H) matmul.  Columns are pre-permuted into the grouped
    #      layout [q_half1 | q_half2 | k_half1 | k_half2 | v]; 1/sqrt(D) is already
    #      folded into the query columns. ----
    qkv = jnp.dot(ln1, wattn_ref[...],
                  preferred_element_type=jnp.float32) + battn_ref[...]

    c = cos_ref[...]                                           # (M, QH)
    s = sin_ref[...]                                           # (M, QH)
    mask = mask_ref[...]                                       # (M, M) additive

    # ---- RoPE for ALL heads at once on contiguous (M, QH) lane slices (VPU only) ----
    q1 = qkv[:, 0:QH]
    q2 = qkv[:, QH:2 * QH]
    k1 = qkv[:, 2 * QH:3 * QH]
    k2 = qkv[:, 3 * QH:4 * QH]
    q1r = q1 * c - q2 * s
    q2r = q2 * c + q1 * s
    k1r = k1 * c - k2 * s
    k2r = k2 * c + k1 * s
    # logn scaling skipped: all factors are exactly 1.0 (S <= config.seq_length)
    # attn_dropout skipped: p=0 / eval mode -> identity

    # ---- per-head scaled causal attention over the full M-row slab ----
    for h in range(NH):
        h0 = h * HALF
        # scores = q_rope . k_rope (1/sqrt(D) folded into q), as sum of the halves.
        # NOTE: contracting dim 1 of both operands implies a small transpose (XLU);
        # negligible at S=8, revisit layout at real S.
        sc = jax.lax.dot_general(q1r[:, h0:h0 + HALF], k1r[:, h0:h0 + HALF],
                                 (((1,), (1,)), ((), ())),
                                 preferred_element_type=jnp.float32)
        sc = sc + jax.lax.dot_general(q2r[:, h0:h0 + HALF], k2r[:, h0:h0 + HALF],
                                      (((1,), (1,)), ((), ())),
                                      preferred_element_type=jnp.float32)
        sc = sc + mask                                          # causal + cross-batch
        sc_max = jnp.max(sc, axis=-1, keepdims=True)
        p = jnp.exp(sc - sc_max)
        denom = jnp.sum(p, axis=-1, keepdims=True)
        p = p * pl.reciprocal(denom, approx=True)               # EUP slot, ~free
        vh = qkv[:, 2 * H + h * D: 2 * H + (h + 1) * D]          # (M, D), standard order
        # write this head's context into its D-lane slice of the (M, H) scratch
        ctx_ref[:, h * D:(h + 1) * D] = jnp.dot(
            p, vh, preferred_element_type=jnp.float32)

    # ---- attention c_proj (no bias): ONE (M,H)x(H,H) matmul + residual ----
    attn_out = jnp.dot(ctx_ref[...], wproj_ref[...],
                       preferred_element_type=jnp.float32)
    ln_input = x + attn_out

    # ---- ln_2 (RMSNorm) ----
    var2 = jnp.mean(ln_input * ln_input, axis=-1, keepdims=True)
    ln2 = ln_input * jax.lax.rsqrt(var2 + EPS) * ln2w_ref[...]

    # ---- SwiGLU MLP with fused [w1 | w2] weight, + residual ----
    a12 = jnp.dot(ln2, w12_ref[...], preferred_element_type=jnp.float32)
    a1 = a12[:, :FF]
    a2 = a12[:, FF:]
    inter = a1 * (a2 * jax.nn.sigmoid(a2))                      # a1 * silu(a2)
    mlp_out = jnp.dot(inter, wc_ref[...], preferred_element_type=jnp.float32)

    o_ref[...] = (ln_input + mlp_out).astype(o_ref.dtype)


# ---------------- one-time parameter / constant prep ----------------
def prep_kernel_inputs(params, cos, sin, attn_mask):
    """Static, per-model-load transforms (not per-call wrapper math)."""
    inv_scale = 1.0 / SCALE

    # Column permutation of w_attn / b_attn into [q1 | q2 | k1 | k2 | v] grouped-by-half.
    q1_idx = np.concatenate([np.arange(h * D, h * D + HALF) for h in range(NH)])
    q2_idx = np.concatenate([np.arange(h * D + HALF, (h + 1) * D) for h in range(NH)])
    k1_idx = H + q1_idx
    k2_idx = H + q2_idx
    v_idx = np.arange(2 * H, 3 * H)
    perm = jnp.asarray(np.concatenate([q1_idx, q2_idx, k1_idx, k2_idx, v_idx]))

    w_attn_p = params["w_attn"][:, perm]
    b_attn_p = params["b_attn"][:, perm]
    # Fold 1/sqrt(D) into the query columns (first H columns of the permuted layout).
    qscale = jnp.concatenate([jnp.full((H,), inv_scale, jnp.float32),
                              jnp.ones((2 * H,), jnp.float32)])[None, :]
    w_attn_p = w_attn_p * qscale
    b_attn_p = b_attn_p * qscale

    # cos/sin have the duplicated layout [c, c] / [s, s]; the half-split RoPE needs only
    # the first half, tiled across heads (lane axis) and batch (row axis): (M, QH).
    cos_all = jnp.tile(jnp.tile(cos[:, :HALF], (1, NH)), (B, 1))
    sin_all = jnp.tile(jnp.tile(sin[:, :HALF], (1, NH)), (B, 1))

    # Fused SwiGLU gate/up weight: one MXU pass instead of two.
    w12 = jnp.concatenate([params["w1"], params["w2"]], axis=1)  # (H, 2*FF)

    # (M, M) additive mask: per-batch causal block on the diagonal, -1e4 everywhere else
    # (cross-batch entries underflow to exactly 0 after softmax in f32).
    mask_full = jnp.full((M, M), -1e4, jnp.float32)
    for b in range(B):
        mask_full = mask_full.at[b * S:(b + 1) * S, b * S:(b + 1) * S].set(attn_mask[b, 0])

    return dict(w_attn_p=w_attn_p, b_attn_p=b_attn_p, w12=w12,
                cos_all=cos_all, sin_all=sin_all, mask_full=mask_full)


# ---------------- wrapper ----------------
def qwen_block_forward(x, params, prepped):
    """x: (B, S, H) f32."""
    x2 = x.reshape(M, H)
    vmem = pl.BlockSpec(memory_space=pltpu.MemorySpace.VMEM)
    # TODO(synk): at real Qwen sizes this single-grid-step design must become a tiled
    #             grid (bf16 operands, weight-streaming BlockSpecs sized for 64 MiB VMEM
    #             on v7x, "parallel" M-tile axis for the 2 TensorCores).
    out = pl.pallas_call(
        qwen_block_kernel,
        out_shape=jax.ShapeDtypeStruct((M, H), jnp.float32),
        in_specs=[vmem] * 11,          # single grid step, everything resident in VMEM
        out_specs=vmem,
        scratch_shapes=[pltpu.VMEM((M, H), jnp.float32)],   # per-head ctx accumulator
    )(x2, params["ln1_w"], prepped["w_attn_p"], prepped["b_attn_p"], params["w_proj"],
      params["ln2_w"], prepped["w12"], params["wc"],
      prepped["cos_all"], prepped["sin_all"], prepped["mask_full"])
    return out.reshape(B, S, H)


# ---------------- pure-JAX reference (for verification) ----------------
def ref_qwen_block(x, params, cos, sin, attn_mask):
    P = jax.lax.Precision.HIGHEST

    def rms(t, w):
        tf = t.astype(jnp.float32)
        var = jnp.mean(tf * tf, axis=-1, keepdims=True)
        return tf * jax.lax.rsqrt(var + EPS) * w.reshape(-1)

    ln1 = rms(x, params["ln1_w"])
    qkv = jnp.dot(ln1, params["w_attn"], precision=P) + params["b_attn"].reshape(-1)
    q, k, v = qkv[..., :H], qkv[..., H:2 * H], qkv[..., 2 * H:]
    q = q.reshape(B, S, NH, D); k = k.reshape(B, S, NH, D); v = v.reshape(B, S, NH, D)

    cos_b = cos.reshape(1, S, 1, D)
    sin_b = sin.reshape(1, S, 1, D)

    def rope(t):
        rot = jnp.concatenate([-t[..., HALF:], t[..., :HALF]], axis=-1)
        return t * cos_b + rot * sin_b

    q, k = rope(q), rope(k)
    q = q.transpose(0, 2, 1, 3); k = k.transpose(0, 2, 1, 3); v = v.transpose(0, 2, 1, 3)
    scores = jnp.einsum("bhqd,bhkd->bhqk", q, k, precision=P) / SCALE + attn_mask
    p = jax.nn.softmax(scores, axis=-1)
    ctx = jnp.einsum("bhqk,bhkd->bhqd", p, v, precision=P)
    ctx = ctx.transpose(0, 2, 1, 3).reshape(B, S, H)
    attn_out = jnp.dot(ctx, params["w_proj"], precision=P)
    ln_input = attn_out + x
    ln2 = rms(ln_input, params["ln2_w"])
    a1 = jnp.dot(ln2, params["w1"], precision=P)
    a2 = jnp.dot(ln2, params["w2"], precision=P)
    mlp_out = jnp.dot(a1 * (a2 * jax.nn.sigmoid(a2)), params["wc"], precision=P)
    return ln_input + mlp_out


if __name__ == "__main__":
    key = jax.random.PRNGKey(0)
    ks = jax.random.split(key, 8)
    init = lambda k, shape: 0.02 * jax.random.normal(k, shape, jnp.float32)

    params = {
        "ln1_w": jnp.ones((1, H), jnp.float32),     # RMSNorm weights init to 1
        "ln2_w": jnp.ones((1, H), jnp.float32),
        "w_attn": init(ks[0], (H, 3 * H)),          # c_attn (with bias)
        "b_attn": init(ks[1], (1, 3 * H)),
        "w_proj": init(ks[2], (H, H)),              # attn c_proj (no_bias=True)
        "w1": init(ks[3], (H, FF)),                 # MLP (no_bias=True)
        "w2": init(ks[4], (H, FF)),
        "wc": init(ks[5], (FF, H)),
    }

    x = jax.random.normal(ks[6], (B, S, H), jnp.float32)

    # rotary embeddings (rot_dim == head_dim)
    pos = jnp.arange(S, dtype=jnp.float32)
    inv_freq = 1.0 / (10000.0 ** (jnp.arange(0, D, 2, dtype=jnp.float32) / D))
    freqs = jnp.outer(pos, inv_freq)                 # (S, D/2)
    emb = jnp.concatenate([freqs, freqs], axis=-1)   # (S, D)
    cos, sin = jnp.cos(emb), jnp.sin(emb)

    # additive causal attention mask, (B, 1, S, S)
    causal = jnp.tril(jnp.ones((S, S), jnp.float32))
    attn_mask = jnp.where(causal == 1.0, 0.0, -1e4)[None, None]
    attn_mask = jnp.broadcast_to(attn_mask, (B, 1, S, S))

    prepped = prep_kernel_inputs(params, cos, sin, attn_mask)

    out = qwen_block_forward(x, params, prepped)
    out = jax.block_until_ready(out)

    ref = ref_qwen_block(x, params, cos, sin, attn_mask)
    np.testing.assert_allclose(np.asarray(out), np.asarray(ref), rtol=1e-3, atol=1e-3)
    print("KERNEL_OK")
</pallas_src>

<mosaic_0001>
module attributes {stable_mosaic.version = 11 : i64} {
  func.func @qwen_block_kernel(%arg0: memref<16x32xf32, #tpu.memory_space<vmem>>, %arg1: memref<1x32xf32, #tpu.memory_space<vmem>>, %arg2: memref<32x96xf32, #tpu.memory_space<vmem>>, %arg3: memref<1x96xf32, #tpu.memory_space<vmem>>, %arg4: memref<32x32xf32, #tpu.memory_space<vmem>>, %arg5: memref<1x32xf32, #tpu.memory_space<vmem>>, %arg6: memref<32x64xf32, #tpu.memory_space<vmem>>, %arg7: memref<32x32xf32, #tpu.memory_space<vmem>>, %arg8: memref<16x16xf32, #tpu.memory_space<vmem>>, %arg9: memref<16x16xf32, #tpu.memory_space<vmem>>, %arg10: memref<16x16xf32, #tpu.memory_space<vmem>>, %arg11: memref<16x32xf32, #tpu.memory_space<vmem>>, %arg12: memref<16x32xf32, #tpu.memory_space<vmem>>) attributes {dimension_semantics = [], scalar_prefetch = 0 : i64, scratch_operands = 1 : i64, tpu.core_type = #tpu.core_type<tc>} {
    %c0 = arith.constant 0 : index
    %c0_0 = arith.constant 0 : index
    %0 = vector.load %arg0[%c0, %c0_0] : memref<16x32xf32, #tpu.memory_space<vmem>>, vector<16x32xf32>
    %1 = arith.mulf %0, %0 : vector<16x32xf32>
    %cst = arith.constant dense<0.000000e+00> : vector<16xf32>
    %2 = vector.multi_reduction <add>, %1, %cst [1] : vector<16x32xf32> to vector<16xf32>
    %3 = vector.shape_cast %2 : vector<16xf32> to vector<16x1xf32>
    %cst_1 = arith.constant 3.200000e+01 : f32
    %4 = vector.broadcast %cst_1 : f32 to vector<16x1xf32>
    %5 = arith.divf %3, %4 : vector<16x1xf32>
    %cst_2 = arith.constant 9.99999997E-7 : f32
    %6 = vector.broadcast %cst_2 : f32 to vector<16x1xf32>
    %7 = arith.addf %5, %6 : vector<16x1xf32>
    %8 = math.rsqrt %7 : vector<16x1xf32>
    %9 = vector.broadcast %8 : vector<16x1xf32> to vector<16x32xf32>
    %10 = arith.mulf %0, %9 : vector<16x32xf32>
    %c0_3 = arith.constant 0 : index
    %c0_4 = arith.constant 0 : index
    %11 = vector.load %arg1[%c0_3, %c0_4] : memref<1x32xf32, #tpu.memory_space<vmem>>, vector<1x32xf32>
    %12 = vector.broadcast %11 : vector<1x32xf32> to vector<16x32xf32>
    %13 = arith.mulf %10, %12 : vector<16x32xf32>
    %c0_5 = arith.constant 0 : index
    %c0_6 = arith.constant 0 : index
    %14 = vector.load %arg2[%c0_5, %c0_6] : memref<32x96xf32, #tpu.memory_space<vmem>>, vector<32x96xf32>
    %cst_7 = arith.constant dense<0.000000e+00> : vector<16x96xf32>
    %15 = tpu.matmul %13, %14, %cst_7 {dimension_numbers = #tpu.dot_dimension_numbers<[1], [0], [0], [1], [0, 0, 1, 1], [], []>} : vector<16x32xf32>, vector<32x96xf32>, vector<16x96xf32> -> vector<16x96xf32>
    %c0_8 = arith.constant 0 : index
    %c0_9 = arith.constant 0 : index
    %16 = vector.load %arg3[%c0_8, %c0_9] : memref<1x96xf32, #tpu.memory_space<vmem>>, vector<1x96xf32>
    %17 = vector.broadcast %16 : vector<1x96xf32> to vector<16x96xf32>
    %18 = arith.addf %15, %17 : vector<16x96xf32>
    %c0_10 = arith.constant 0 : index
    %c0_11 = arith.constant 0 : index
    %19 = vector.load %arg8[%c0_10, %c0_11] : memref<16x16xf32, #tpu.memory_space<vmem>>, vector<16x16xf32>
    %c0_12 = arith.constant 0 : index
    %c0_13 = arith.constant 0 : index
    %20 = vector.load %arg9[%c0_12, %c0_13] : memref<16x16xf32, #tpu.memory_space<vmem>>, vector<16x16xf32>
    %c0_14 = arith.constant 0 : index
    %c0_15 = arith.constant 0 : index
    %21 = vector.load %arg10[%c0_14, %c0_15] : memref<16x16xf32, #tpu.memory_space<vmem>>, vector<16x16xf32>
    %22 = vector.extract_strided_slice %18 {offsets = [0, 0], sizes = [16, 16], strides = [1, 1]} : vector<16x96xf32> to vector<16x16xf32>
    %23 = vector.extract_strided_slice %18 {offsets = [0, 16], sizes = [16, 16], strides = [1, 1]} : vector<16x96xf32> to vector<16x16xf32>
    %24 = vector.extract_strided_slice %18 {offsets = [0, 32], sizes = [16, 16], strides = [1, 1]} : vector<16x96xf32> to vector<16x16xf32>
    %25 = vector.extract_strided_slice %18 {offsets = [0, 48], sizes = [16, 16], strides = [1, 1]} : vector<16x96xf32> to vector<16x16xf32>
    %26 = arith.mulf %22, %19 : vector<16x16xf32>
    %27 = arith.mulf %23, %20 : vector<16x16xf32>
    %28 = arith.subf %26, %27 : vector<16x16xf32>
    %29 = arith.mulf %23, %19 : vector<16x16xf32>
    %30 = arith.mulf %22, %20 : vector<16x16xf32>
    %31 = arith.addf %29, %30 : vector<16x16xf32>
    %32 = arith.mulf %24, %19 : vector<16x16xf32>
    %33 = arith.mulf %25, %20 : vector<16x16xf32>
    %34 = arith.subf %32, %33 : vector<16x16xf32>
    %35 = arith.mulf %25, %19 : vector<16x16xf32>
    %36 = arith.mulf %24, %20 : vector<16x16xf32>
    %37 = arith.addf %35, %36 : vector<16x16xf32>
    %38 = vector.extract_strided_slice %28 {offsets = [0, 0], sizes = [16, 4], strides = [1, 1]} : vector<16x16xf32> to vector<16x4xf32>
    %39 = vector.extract_strided_slice %34 {offsets = [0, 0], sizes = [16, 4], strides = [1, 1]} : vector<16x16xf32> to vector<16x4xf32>
    %cst_16 = arith.constant dense<0.000000e+00> : vector<16x16xf32>
    %40 = tpu.matmul %38, %39, %cst_16 {dimension_numbers = #tpu.dot_dimension_numbers<[1], [1], [0], [0], [0, 0, 1, 0], [], []>} : vector<16x4xf32>, vector<16x4xf32>, vector<16x16xf32> -> vector<16x16xf32>
    %41 = vector.extract_strided_slice %31 {offsets = [0, 0], sizes = [16, 4], strides = [1, 1]} : vector<16x16xf32> to vector<16x4xf32>
    %42 = vector.extract_strided_slice %37 {offsets = [0, 0], sizes = [16, 4], strides = [1, 1]} : vector<16x16xf32> to vector<16x4xf32>
    %cst_17 = arith.constant dense<0.000000e+00> : vector<16x16xf32>
    %43 = tpu.matmul %41, %42, %cst_17 {dimension_numbers = #tpu.dot_dimension_numbers<[1], [1], [0], [0], [0, 0, 1, 0], [], []>} : vector<16x4xf32>, vector<16x4xf32>, vector<16x16xf32> -> vector<16x16xf32>
    %44 = arith.addf %40, %43 : vector<16x16xf32>
    %45 = arith.addf %44, %21 : vector<16x16xf32>
    %cst_18 = arith.constant dense<0xFF800000> : vector<16xf32>
    %46 = vector.multi_reduction <maximumf>, %45, %cst_18 [1] : vector<16x16xf32> to vector<16xf32>
    %47 = vector.shape_cast %46 : vector<16xf32> to vector<16x1xf32>
    %48 = vector.broadcast %47 : vector<16x1xf32> to vector<16x16xf32>
    %49 = arith.subf %45, %48 : vector<16x16xf32>
    %50 = math.exp %49 : vector<16x16xf32>
    %cst_19 = arith.constant dense<0.000000e+00> : vector<16xf32>
    %51 = vector.multi_reduction <add>, %50, %cst_19 [1] : vector<16x16xf32> to vector<16xf32>
    %52 = vector.shape_cast %51 : vector<16xf32> to vector<16x1xf32>
    %53 = tpu.reciprocal %52 {approx = true} : vector<16x1xf32> -> vector<16x1xf32>
    %54 = vector.broadcast %53 : vector<16x1xf32> to vector<16x16xf32>
    %55 = arith.mulf %50, %54 : vector<16x16xf32>
    %56 = vector.extract_strided_slice %18 {offsets = [0, 64], sizes = [16, 8], strides = [1, 1]} : vector<16x96xf32> to vector<16x8xf32>
    %cst_20 = arith.constant dense<0.000000e+00> : vector<16x8xf32>
    %57 = tpu.matmul %55, %56, %cst_20 {dimension_numbers = #tpu.dot_dimension_numbers<[1], [0], [0], [1], [0, 0, 1, 1], [], []>} : vector<16x16xf32>, vector<16x8xf32>, vector<16x8xf32> -> vector<16x8xf32>
    %c0_21 = arith.constant 0 : index
    %c0_22 = arith.constant 0 : index
    %58 = vector.load %arg12[%c0_21, %c0_22] : memref<16x32xf32, #tpu.memory_space<vmem>>, vector<16x8xf32>
    tpu.vector_store %arg12[%c0_21, %c0_22], %57 {strides = array<i32>} : memref<16x32xf32, #tpu.memory_space<vmem>>, vector<16x8xf32>,
    %59 = vector.extract_strided_slice %28 {offsets = [0, 4], sizes = [16, 4], strides = [1, 1]} : vector<16x16xf32> to vector<16x4xf32>
    %60 = vector.extract_strided_slice %34 {offsets = [0, 4], sizes = [16, 4], strides = [1, 1]} : vector<16x16xf32> to vector<16x4xf32>
    %cst_23 = arith.constant dense<0.000000e+00> : vector<16x16xf32>
    %61 = tpu.matmul %59, %60, %cst_23 {dimension_numbers = #tpu.dot_dimension_numbers<[1], [1], [0], [0], [0, 0, 1, 0], [], []>} : vector<16x4xf32>, vector<16x4xf32>, vector<16x16xf32> -> vector<16x16xf32>
    %62 = vector.extract_strided_slice %31 {offsets = [0, 4], sizes = [16, 4], strides = [1, 1]} : vector<16x16xf32> to vector<16x4xf32>
    %63 = vector.extract_strided_slice %37 {offsets = [0, 4], sizes = [16, 4], strides = [1, 1]} : vector<16x16xf32> to vector<16x4xf32>
    %cst_24 = arith.constant dense<0.000000e+00> : vector<16x16xf32>
    %64 = tpu.matmul %62, %63, %cst_24 {dimension_numbers = #tpu.dot_dimension_numbers<[1], [1], [0], [0], [0, 0, 1, 0], [], []>} : vector<16x4xf32>, vector<16x4xf32>, vector<16x16xf32> -> vector<16x16xf32>
    %65 = arith.addf %61, %64 : vector<16x16xf32>
    %66 = arith.addf %65, %21 : vector<16x16xf32>
    %cst_25 = arith.constant dense<0xFF800000> : vector<16xf32>
    %67 = vector.multi_reduction <maximumf>, %66, %cst_25 [1] : vector<16x16xf32> to vector<16xf32>
    %68 = vector.shape_cast %67 : vector<16xf32> to vector<16x1xf32>
    %69 = vector.broadcast %68 : vector<16x1xf32> to vector<16x16xf32>
    %70 = arith.subf %66, %69 : vector<16x16xf32>
    %71 = math.exp %70 : vector<16x16xf32>
    %cst_26 = arith.constant dense<0.000000e+00> : vector<16xf32>
    %72 = vector.multi_reduction <add>, %71, %cst_26 [1] : vector<16x16xf32> to vector<16xf32>
    %73 = vector.shape_cast %72 : vector<16xf32> to vector<16x1xf32>
    %74 = tpu.reciprocal %73 {approx = true} : vector<16x1xf32> -> vector<16x1xf32>
    %75 = vector.broadcast %74 : vector<16x1xf32> to vector<16x16xf32>
    %76 = arith.mulf %71, %75 : vector<16x16xf32>
    %77 = vector.extract_strided_slice %18 {offsets = [0, 72], sizes = [16, 8], strides = [1, 1]} : vector<16x96xf32> to vector<16x8xf32>
    %cst_27 = arith.constant dense<0.000000e+00> : vector<16x8xf32>
    %78 = tpu.matmul %76, %77, %cst_27 {dimension_numbers = #tpu.dot_dimension_numbers<[1], [0], [0], [1], [0, 0, 1, 1], [], []>} : vector<16x16xf32>, vector<16x8xf32>, vector<16x8xf32> -> vector<16x8xf32>
    %c0_28 = arith.constant 0 : index
    %c8 = arith.constant 8 : index
    %79 = vector.load %arg12[%c0_28, %c8] : memref<16x32xf32, #tpu.memory_space<vmem>>, vector<16x8xf32>
    tpu.vector_store %arg12[%c0_28, %c8], %78 {strides = array<i32>} : memref<16x32xf32, #tpu.memory_space<vmem>>, vector<16x8xf32>,
    %80 = vector.extract_strided_slice %28 {offsets = [0, 8], sizes = [16, 4], strides = [1, 1]} : vector<16x16xf32> to vector<16x4xf32>
    %81 = vector.extract_strided_slice %34 {offsets = [0, 8], sizes = [16, 4], strides = [1, 1]} : vector<16x16xf32> to vector<16x4xf32>
    %cst_29 = arith.constant dense<0.000000e+00> : vector<16x16xf32>
    %82 = tpu.matmul %80, %81, %cst_29 {dimension_numbers = #tpu.dot_dimension_numbers<[1], [1], [0], [0], [0, 0, 1, 0], [], []>} : vector<16x4xf32>, vector<16x4xf32>, vector<16x16xf32> -> vector<16x16xf32>
    %83 = vector.extract_strided_slice %31 {offsets = [0, 8], sizes = [16, 4], strides = [1, 1]} : vector<16x16xf32> to vector<16x4xf32>
    %84 = vector.extract_strided_slice %37 {offsets = [0, 8], sizes = [16, 4], strides = [1, 1]} : vector<16x16xf32> to vector<16x4xf32>
    %cst_30 = arith.constant dense<0.000000e+00> : vector<16x16xf32>
    %85 = tpu.matmul %83, %84, %cst_30 {dimension_numbers = #tpu.dot_dimension_numbers<[1], [1], [0], [0], [0, 0, 1, 0], [], []>} : vector<16x4xf32>, vector<16x4xf32>, vector<16x16xf32> -> vector<16x16xf32>
    %86 = arith.addf %82, %85 : vector<16x16xf32>
    %87 = arith.addf %86, %21 : vector<16x16xf32>
    %cst_31 = arith.constant dense<0xFF800000> : vector<16xf32>
    %88 = vector.multi_reduction <maximumf>, %87, %cst_31 [1] : vector<16x16xf32> to vector<16xf32>
    %89 = vector.shape_cast %88 : vector<16xf32> to vector<16x1xf32>
    %90 = vector.broadcast %89 : vector<16x1xf32> to vector<16x16xf32>
    %91 = arith.subf %87, %90 : vector<16x16xf32>
    %92 = math.exp %91 : vector<16x16xf32>
    %cst_32 = arith.constant dense<0.000000e+00> : vector<16xf32>
    %93 = vector.multi_reduction <add>, %92, %cst_32 [1] : vector<16x16xf32> to vector<16xf32>
    %94 = vector.shape_cast %93 : vector<16xf32> to vector<16x1xf32>
    %95 = tpu.reciprocal %94 {approx = true} : vector<16x1xf32> -> vector<16x1xf32>
    %96 = vector.broadcast %95 : vector<16x1xf32> to vector<16x16xf32>
    %97 = arith.mulf %92, %96 : vector<16x16xf32>
    %98 = vector.extract_strided_slice %18 {offsets = [0, 80], sizes = [16, 8], strides = [1, 1]} : vector<16x96xf32> to vector<16x8xf32>
    %cst_33 = arith.constant dense<0.000000e+00> : vector<16x8xf32>
    %99 = tpu.matmul %97, %98, %cst_33 {dimension_numbers = #tpu.dot_dimension_numbers<[1], [0], [0], [1], [0, 0, 1, 1], [], []>} : vector<16x16xf32>, vector<16x8xf32>, vector<16x8xf32> -> vector<16x8xf32>
    %c0_34 = arith.constant 0 : index
    %c16 = arith.constant 16 : index
    %100 = vector.load %arg12[%c0_34, %c16] : memref<16x32xf32, #tpu.memory_space<vmem>>, vector<16x8xf32>
    tpu.vector_store %arg12[%c0_34, %c16], %99 {strides = array<i32>} : memref<16x32xf32, #tpu.memory_space<vmem>>, vector<16x8xf32>,
    %101 = vector.extract_strided_slice %28 {offsets = [0, 12], sizes = [16, 4], strides = [1, 1]} : vector<16x16xf32> to vector<16x4xf32>
    %102 = vector.extract_strided_slice %34 {offsets = [0, 12], sizes = [16, 4], strides = [1, 1]} : vector<16x16xf32> to vector<16x4xf32>
    %cst_35 = arith.constant dense<0.000000e+00> : vector<16x16xf32>
    %103 = tpu.matmul %101, %102, %cst_35 {dimension_numbers = #tpu.dot_dimension_numbers<[1], [1], [0], [0], [0, 0, 1, 0], [], []>} : vector<16x4xf32>, vector<16x4xf32>, vector<16x16xf32> -> vector<16x16xf32>
    %104 = vector.extract_strided_slice %31 {offsets = [0, 12], sizes = [16, 4], strides = [1, 1]} : vector<16x16xf32> to vector<16x4xf32>
    %105 = vector.extract_strided_slice %37 {offsets = [0, 12], sizes = [16, 4], strides = [1, 1]} : vector<16x16xf32> to vector<16x4xf32>
    %cst_36 = arith.constant dense<0.000000e+00> : vector<16x16xf32>
    %106 = tpu.matmul %104, %105, %cst_36 {dimension_numbers = #tpu.dot_dimension_numbers<[1], [1], [0], [0], [0, 0, 1, 0], [], []>} : vector<16x4xf32>, vector<16x4xf32>, vector<16x16xf32> -> vector<16x16xf32>
    %107 = arith.addf %103, %106 : vector<16x16xf32>
    %108 = arith.addf %107, %21 : vector<16x16xf32>
    %cst_37 = arith.constant dense<0xFF800000> : vector<16xf32>
    %109 = vector.multi_reduction <maximumf>, %108, %cst_37 [1] : vector<16x16xf32> to vector<16xf32>
    %110 = vector.shape_cast %109 : vector<16xf32> to vector<16x1xf32>
    %111 = vector.broadcast %110 : vector<16x1xf32> to vector<16x16xf32>
    %112 = arith.subf %108, %111 : vector<16x16xf32>
    %113 = math.exp %112 : vector<16x16xf32>
    %cst_38 = arith.constant dense<0.000000e+00> : vector<16xf32>
    %114 = vector.multi_reduction <add>, %113, %cst_38 [1] : vector<16x16xf32> to vector<16xf32>
    %115 = vector.shape_cast %114 : vector<16xf32> to vector<16x1xf32>
    %116 = tpu.reciprocal %115 {approx = true} : vector<16x1xf32> -> vector<16x1xf32>
    %117 = vector.broadcast %116 : vector<16x1xf32> to vector<16x16xf32>
    %118 = arith.mulf %113, %117 : vector<16x16xf32>
    %119 = vector.extract_strided_slice %18 {offsets = [0, 88], sizes = [16, 8], strides = [1, 1]} : vector<16x96xf32> to vector<16x8xf32>
    %cst_39 = arith.constant dense<0.000000e+00> : vector<16x8xf32>
    %120 = tpu.matmul %118, %119, %cst_39 {dimension_numbers = #tpu.dot_dimension_numbers<[1], [0], [0], [1], [0, 0, 1, 1], [], []>} : vector<16x16xf32>, vector<16x8xf32>, vector<16x8xf32> -> vector<16x8xf32>
    %c0_40 = arith.constant 0 : index
    %c24 = arith.constant 24 : index
    %121 = vector.load %arg12[%c0_40, %c24] : memref<16x32xf32, #tpu.memory_space<vmem>>, vector<16x8xf32>
    tpu.vector_store %arg12[%c0_40, %c24], %120 {strides = array<i32>} : memref<16x32xf32, #tpu.memory_space<vmem>>, vector<16x8xf32>,
    %c0_41 = arith.constant 0 : index
    %c0_42 = arith.constant 0 : index
    %122 = vector.load %arg12[%c0_41, %c0_42] : memref<16x32xf32, #tpu.memory_space<vmem>>, vector<16x32xf32>
    %c0_43 = arith.constant 0 : index
    %c0_44 = arith.constant 0 : index
    %123 = vector.load %arg4[%c0_43, %c0_44] : memref<32x32xf32, #tpu.memory_space<vmem>>, vector<32x32xf32>
    %cst_45 = arith.constant dense<0.000000e+00> : vector<16x32xf32>
    %124 = tpu.matmul %122, %123, %cst_45 {dimension_numbers = #tpu.dot_dimension_numbers<[1], [0], [0], [1], [0, 0, 1, 1], [], []>} : vector<16x32xf32>, vector<32x32xf32>, vector<16x32xf32> -> vector<16x32xf32>
    %125 = arith.addf %0, %124 : vector<16x32xf32>
    %126 = arith.mulf %125, %125 : vector<16x32xf32>
    %cst_46 = arith.constant dense<0.000000e+00> : vector<16xf32>
    %127 = vector.multi_reduction <add>, %126, %cst_46 [1] : vector<16x32xf32> to vector<16xf32>
    %128 = vector.shape_cast %127 : vector<16xf32> to vector<16x1xf32>
    %cst_47 = arith.constant 3.200000e+01 : f32
    %129 = vector.broadcast %cst_47 : f32 to vector<16x1xf32>
    %130 = arith.divf %128, %129 : vector<16x1xf32>
    %cst_48 = arith.constant 9.99999997E-7 : f32
    %131 = vector.broadcast %cst_48 : f32 to vector<16x1xf32>
    %132 = arith.addf %130, %131 : vector<16x1xf32>
    %133 = math.rsqrt %132 : vector<16x1xf32>
    %134 = vector.broadcast %133 : vector<16x1xf32> to vector<16x32xf32>
    %135 = arith.mulf %125, %134 : vector<16x32xf32>
    %c0_49 = arith.constant 0 : index
    %c0_50 = arith.constant 0 : index
    %136 = vector.load %arg5[%c0_49, %c0_50] : memref<1x32xf32, #tpu.memory_space<vmem>>, vector<1x32xf32>
    %137 = vector.broadcast %136 : vector<1x32xf32> to vector<16x32xf32>
    %138 = arith.mulf %135, %137 : vector<16x32xf32>
    %c0_51 = arith.constant 0 : index
    %c0_52 = arith.constant 0 : index
    %139 = vector.load %arg6[%c0_51, %c0_52] : memref<32x64xf32, #tpu.memory_space<vmem>>, vector<32x64xf32>
    %cst_53 = arith.constant dense<0.000000e+00> : vector<16x64xf32>
    %140 = tpu.matmul %138, %139, %cst_53 {dimension_numbers = #tpu.dot_dimension_numbers<[1], [0], [0], [1], [0, 0, 1, 1], [], []>} : vector<16x32xf32>, vector<32x64xf32>, vector<16x64xf32> -> vector<16x64xf32>
    %141 = vector.extract_strided_slice %140 {offsets = [0, 0], sizes = [16, 32], strides = [1, 1]} : vector<16x64xf32> to vector<16x32xf32>
    %142 = vector.extract_strided_slice %140 {offsets = [0, 32], sizes = [16, 32], strides = [1, 1]} : vector<16x64xf32> to vector<16x32xf32>
    %143 = arith.negf %142 : vector<16x32xf32>
    %144 = math.exp %143 : vector<16x32xf32>
    %cst_54 = arith.constant 1.000000e+00 : f32
    %145 = vector.broadcast %cst_54 : f32 to vector<16x32xf32>
    %146 = arith.addf %145, %144 : vector<16x32xf32>
    %147 = arith.divf %145, %146 : vector<16x32xf32>
    %148 = arith.mulf %142, %147 : vector<16x32xf32>
    %149 = arith.mulf %141, %148 : vector<16x32xf32>
    %c0_55 = arith.constant 0 : index
    %c0_56 = arith.constant 0 : index
    %150 = vector.load %arg7[%c0_55, %c0_56] : memref<32x32xf32, #tpu.memory_space<vmem>>, vector<32x32xf32>
    %cst_57 = arith.constant dense<0.000000e+00> : vector<16x32xf32>
    %151 = tpu.matmul %149, %150, %cst_57 {dimension_numbers = #tpu.dot_dimension_numbers<[1], [0], [0], [1], [0, 0, 1, 1], [], []>} : vector<16x32xf32>, vector<32x32xf32>, vector<16x32xf32> -> vector<16x32xf32>
    %152 = arith.addf %125, %151 : vector<16x32xf32>
    %c0_58 = arith.constant 0 : index
    %c0_59 = arith.constant 0 : index
    %153 = vector.load %arg11[%c0_58, %c0_59] : memref<16x32xf32, #tpu.memory_space<vmem>>, vector<16x32xf32>
    tpu.vector_store %arg11[%c0_58, %c0_59], %152 {strides = array<i32>} : memref<16x32xf32, #tpu.memory_space<vmem>>, vector<16x32xf32>,
    return
  }
}

</mosaic_0001>

<llo_original>
// kernel: tpu_custom_call.1
$region0: #{tpu_custom_call.1}
  #allocation0 [shape = 'u32[]', space=smem, size = 0x4, offset = 0x4, fixed_abs, tag = 'smem constant byte address 0x4 - core index']
  #allocation1 [shape = 'u32[144,128]{1,0:T(1,128)}', space=vmem, size = 0x12000, scoped, tag = 'internal scratch']
  #allocation2 [shape = 'f32[16,32]{1,0:T(8,128)}', space=vmem, size = 0x2000, scoped, tag = 'scratch operand']
  %s0 = inlined_call_operand.hbm [shape: f32[16,32], index: 0, kind: input, shape index: {}]
  %s1 = inlined_call_operand.vmem [shape: f32[1,32], index: 1, kind: input, shape index: {}]
  %s2 = inlined_call_operand.hbm [shape: f32[32,96], index: 2, kind: input, shape index: {}]
  %s3 = inlined_call_operand.vmem [shape: f32[1,96], index: 3, kind: input, shape index: {}]
  %s4 = inlined_call_operand.hbm [shape: f32[32,32], index: 4, kind: input, shape index: {}]
  %s5 = inlined_call_operand.hbm [shape: f32[1,32], index: 5, kind: input, shape index: {}]
  %s6 = inlined_call_operand.hbm [shape: f32[32,64], index: 6, kind: input, shape index: {}]
  %s7 = inlined_call_operand.hbm [shape: f32[32,32], index: 7, kind: input, shape index: {}]
  %s8 = inlined_call_operand.vmem [shape: f32[16,16], index: 8, kind: input, shape index: {}]
  %s9 = inlined_call_operand.vmem [shape: f32[16,16], index: 9, kind: input, shape index: {}]
  %s10 = inlined_call_operand.hbm [shape: f32[16,16], index: 10, kind: input, shape index: {}]
  %s11 = inlined_call_operand.hbm [shape: f32[16,32], index: 11, kind: output, shape index: {}]
  %s12 = sld [smem:[#allocation0]]
  $region82: #{tpu_custom_call.1} parent=0
    _
  %s14 = ssub.s32 1, %s12
  %s15 = scalar_select 0, %s14, %s12
  $region1: #{tpu_custom_call.1} parent=0
    #allocation3 [shape = 'u8[8192]{0}', space=vmem, size = 0x2000, scoped, tag = 'input window, operand 0, single buffered']
    #allocation4 [shape = 's32[1]{0}', space=sflag, size = 0x4, scoped, tag = 'scoped memory for tpu_custom_call.1']
    #allocation5 [shape = 's32[1]{0}', space=sflag, size = 0x4, scoped, tag = 'scoped memory for tpu_custom_call.1']
    #allocation6 [shape = 'u8[16384]{0}', space=vmem, size = 0x4000, scoped, tag = 'input window, operand 2, single buffered']
    #allocation7 [shape = 's32[1]{0}', space=sflag, size = 0x4, scoped, tag = 'scoped memory for tpu_custom_call.1']
    #allocation8 [shape = 'u8[16384]{0}', space=vmem, size = 0x4000, scoped, tag = 'input window, operand 4, single buffered']
    #allocation9 [shape = 'u8[512]{0}', space=vmem, size = 0x400, scoped, tag = 'input window, operand 5, single buffered']
    #allocation10 [shape = 's32[1]{0}', space=sflag, size = 0x4, scoped, tag = 'scoped memory for tpu_custom_call.1']
    #allocation11 [shape = 'u8[16384]{0}', space=vmem, size = 0x4000, scoped, tag = 'input window, operand 6, single buffered']
    #allocation12 [shape = 'u8[16384]{0}', space=vmem, size = 0x4000, scoped, tag = 'input window, operand 7, single buffered']
    #allocation13 [shape = 's32[1]{0}', space=sflag, size = 0x4, scoped, tag = 'scoped memory for tpu_custom_call.1']
    #allocation14 [shape = 'u8[8192]{0}', space=vmem, size = 0x2000, scoped, tag = 'input window, operand 10, single buffered']
    #allocation15 [shape = 'u8[8192]{0}', space=vmem, size = 0x2000, scoped, tag = 'output window, operand 0, single buffered']
    %16 = vsyncpa [#allocation4], 0
    %17 = vsyncpa [#allocation7], 0
    %18 = vsyncpa [#allocation10], 0
    %19 = vsyncpa [#allocation13], 0
    %20 = vsyncpa [#allocation5], 0
    // Predicated region
    $region2: #{tpu_custom_call.1} parent=1 // pred_check
      _
    $region3: #{tpu_custom_call.1} parent=1 // pred_check_branch
      %22 = sbr.rel (0) target = $region5
    $region4: #{tpu_custom_call.1} parent=1 // pred_region
      %s24 = ssub.s32 256, 256
      %25 = vsyncadd [#allocation4], %s24
      %s26 = sshll.u32 [#allocation3], 4
      %s27 = int_to_ptr.vmem [resolvable:$true] %s26
      %32 = dma.hbm_to_vmem [thread:$0]  %s0, 256, %s27, [#allocation4], 128, 128, 8
    $region5: #{tpu_custom_call.1} parent=1 // pred_fallthru
      _
    // Predicated region
    $region6: #{tpu_custom_call.1} parent=1 // pred_check
      _
    $region7: #{tpu_custom_call.1} parent=1 // pred_check_branch
      %34 = sbr.rel (0) target = $region9
    $region8: #{tpu_custom_call.1} parent=1 // pred_region
      _
    $region9: #{tpu_custom_call.1} parent=1 // pred_fallthru
      _
    // Predicated region
    $region10: #{tpu_custom_call.1} parent=1 // pred_check
      _
    $region11: #{tpu_custom_call.1} parent=1 // pred_check_branch
      %36 = sbr.rel (0) target = $region13
    $region12: #{tpu_custom_call.1} parent=1 // pred_region
      %s38 = ssub.s32 512, 512
      %39 = vsyncadd [#allocation7], %s38
      %s40 = sshll.u32 [#allocation6], 4
      %s41 = int_to_ptr.vmem [resolvable:$true] %s40
      %46 = dma.hbm_to_vmem [thread:$0]  %s2, 512, %s41, [#allocation7], 128, 128, 8
    $region13: #{tpu_custom_call.1} parent=1 // pred_fallthru
      _
    // Predicated region
    $region14: #{tpu_custom_call.1} parent=1 // pred_check
      _
    $region15: #{tpu_custom_call.1} parent=1 // pred_check_branch
      %48 = sbr.rel (0) target = $region17
    $region16: #{tpu_custom_call.1} parent=1 // pred_region
      _
    $region17: #{tpu_custom_call.1} parent=1 // pred_fallthru
      _
    // Predicated region
    $region18: #{tpu_custom_call.1} parent=1 // pred_check
      _
    $region19: #{tpu_custom_call.1} parent=1 // pred_check_branch
      %50 = sbr.rel (0) target = $region21
    $region20: #{tpu_custom_call.1} parent=1 // pred_region
      %s52 = ssub.s32 512, 512
      %53 = vsyncadd [#allocation7], %s52
      %s54 = sshll.u32 [#allocation8], 4
      %s55 = int_to_ptr.vmem [resolvable:$true] %s54
      %60 = dma.hbm_to_vmem [thread:$0]  %s4, 512, %s55, [#allocation7], 128, 128, 8
    $region21: #{tpu_custom_call.1} parent=1 // pred_fallthru
      _
    // Predicated region
    $region22: #{tpu_custom_call.1} parent=1 // pred_check
      _
    $region23: #{tpu_custom_call.1} parent=1 // pred_check_branch
      %62 = sbr.rel (0) target = $region25
    $region24: #{tpu_custom_call.1} parent=1 // pred_region
      %s64 = ssub.s32 16, 16
      %65 = vsyncadd [#allocation10], %s64
      %s67 = sshll.u32 [#allocation9], 4
      %s68 = int_to_ptr.vmem [resolvable:$true] %s67
      %70 = dma.hbm_to_vmem [thread:$0]  %s5, 16, %s68, [#allocation10]
    $region25: #{tpu_custom_call.1} parent=1 // pred_fallthru
      _
    // Predicated region
    $region26: #{tpu_custom_call.1} parent=1 // pred_check
      _
    $region27: #{tpu_custom_call.1} parent=1 // pred_check_branch
      %72 = sbr.rel (0) target = $region29
    $region28: #{tpu_custom_call.1} parent=1 // pred_region
      %s74 = ssub.s32 512, 512
      %75 = vsyncadd [#allocation10], %s74
      %s76 = sshll.u32 [#allocation11], 4
      %s77 = int_to_ptr.vmem [resolvable:$true] %s76
      %82 = dma.hbm_to_vmem [thread:$0]  %s6, 512, %s77, [#allocation10], 128, 128, 8
    $region29: #{tpu_custom_call.1} parent=1 // pred_fallthru
      _
    // Predicated region
    $region30: #{tpu_custom_call.1} parent=1 // pred_check
      _
    $region31: #{tpu_custom_call.1} parent=1 // pred_check_branch
      %84 = sbr.rel (0) target = $region33
    $region32: #{tpu_custom_call.1} parent=1 // pred_region
      %s86 = ssub.s32 512, 512
      %87 = vsyncadd [#allocation13], %s86
      %s88 = sshll.u32 [#allocation12], 4
      %s89 = int_to_ptr.vmem [resolvable:$true] %s88
      %94 = dma.hbm_to_vmem [thread:$0]  %s7, 512, %s89, [#allocation13], 128, 128, 8
    $region33: #{tpu_custom_call.1} parent=1 // pred_fallthru
      _
    // Predicated region
    $region34: #{tpu_custom_call.1} parent=1 // pred_check
      _
    $region35: #{tpu_custom_call.1} parent=1 // pred_check_branch
      %96 = sbr.rel (0) target = $region37
    $region36: #{tpu_custom_call.1} parent=1 // pred_region
      _
    $region37: #{tpu_custom_call.1} parent=1 // pred_fallthru
      _
    // Predicated region
    $region38: #{tpu_custom_call.1} parent=1 // pred_check
      _
    $region39: #{tpu_custom_call.1} parent=1 // pred_check_branch
      %98 = sbr.rel (0) target = $region41
    $region40: #{tpu_custom_call.1} parent=1 // pred_region
      _
    $region41: #{tpu_custom_call.1} parent=1 // pred_fallthru
      _
    // Predicated region
    $region42: #{tpu_custom_call.1} parent=1 // pred_check
      _
    $region43: #{tpu_custom_call.1} parent=1 // pred_check_branch
      %100 = sbr.rel (0) target = $region45
    $region44: #{tpu_custom_call.1} parent=1 // pred_region
      %s102 = ssub.s32 256, 256
      %103 = vsyncadd [#allocation13], %s102
      %s104 = sshll.u32 [#allocation14], 4
      %s105 = int_to_ptr.vmem [resolvable:$true] %s104
      %110 = dma.hbm_to_vmem [thread:$0]  %s10, 256, %s105, [#allocation13], 128, 128, 8
    $region45: #{tpu_custom_call.1} parent=1 // pred_fallthru
      _
    // Predicated region
    $region46: #{tpu_custom_call.1} parent=1 // pred_check
      _
    $region47: #{tpu_custom_call.1} parent=1 // pred_check_branch
      %112 = sbr.rel (0) target = $region49
    $region48: #{tpu_custom_call.1} parent=1 // pred_region
      %113 = dma.done [#allocation4], 256
    $region49: #{tpu_custom_call.1} parent=1 // pred_fallthru
      _
    // Predicated region
    $region50: #{tpu_custom_call.1} parent=1 // pred_check
      _
    $region51: #{tpu_custom_call.1} parent=1 // pred_check_branch
      %115 = sbr.rel (0) target = $region53
    $region52: #{tpu_custom_call.1} parent=1 // pred_region
      %116 = dma.done [#allocation7], 512
    $region53: #{tpu_custom_call.1} parent=1 // pred_fallthru
      _
    // Predicated region
    $region54: #{tpu_custom_call.1} parent=1 // pred_check
      _
    $region55: #{tpu_custom_call.1} parent=1 // pred_check_branch
      %118 = sbr.rel (0) target = $region57
    $region56: #{tpu_custom_call.1} parent=1 // pred_region
      %119 = dma.done [#allocation7], 512
    $region57: #{tpu_custom_call.1} parent=1 // pred_fallthru
      _
    // Predicated region
    $region58: #{tpu_custom_call.1} parent=1 // pred_check
      _
    $region59: #{tpu_custom_call.1} parent=1 // pred_check_branch
      %121 = sbr.rel (0) target = $region61
    $region60: #{tpu_custom_call.1} parent=1 // pred_region
      %122 = dma.done [#allocation10], 16
    $region61: #{tpu_custom_call.1} parent=1 // pred_fallthru
      _
    // Predicated region
    $region62: #{tpu_custom_call.1} parent=1 // pred_check
      _
    $region63: #{tpu_custom_call.1} parent=1 // pred_check_branch
      %124 = sbr.rel (0) target = $region65
    $region64: #{tpu_custom_call.1} parent=1 // pred_region
      %125 = dma.done [#allocation10], 512
    $region65: #{tpu_custom_call.1} parent=1 // pred_fallthru
      _
    // Predicated region
    $region66: #{tpu_custom_call.1} parent=1 // pred_check
      _
    $region67: #{tpu_custom_call.1} parent=1 // pred_check_branch
      %127 = sbr.rel (0) target = $region69
    $region68: #{tpu_custom_call.1} parent=1 // pred_region
      %128 = dma.done [#allocation13], 512
    $region69: #{tpu_custom_call.1} parent=1 // pred_fallthru
      _
    // Predicated region
    $region70: #{tpu_custom_call.1} parent=1 // pred_check
      _
    $region71: #{tpu_custom_call.1} parent=1 // pred_check_branch
      %130 = sbr.rel (0) target = $region73
    $region72: #{tpu_custom_call.1} parent=1 // pred_region
      %131 = dma.done [#allocation13], 256
    $region73: #{tpu_custom_call.1} parent=1 // pred_fallthru
      _
    %v132 = vld [vmem:[#allocation3] sm:$0xff]
    %v133 = vld [vmem:[#allocation3 + $0x8] sm:$0xff]
    %v134 = vmul.f32 %v132, %v132
    %v135 = vmul.f32 %v133, %v133
    %vm136 = vcmask 261120
    %v137 = vsel %vm136, %v134, 0.0
    %138 = vadd.xlane.f32.xlu0 %v137
    %v139 = vpop.xlane.xlu0 %138
    %v140 = vsel %vm136, %v135, 0.0
    %141 = vadd.xlane.f32.xlu0 %v140
    %v142 = vpop.xlane.xlu0 %141
    %v143 = vrcp.pop 32.0
    %v144 = vmul.f32 %v139, %v143
    %v145 = vmul.f32 %v142, %v143
    %v146 = vadd.f32 %v144, 1e-06
    %v147 = vadd.f32 %v145, 1e-06
    %v148 = vrsqrt.pop %v146
    %v149 = vrsqrt.pop %v147
    %v150 = vmul.f32 %v132, %v148
    %v151 = vmul.f32 %v133, %v149
    %v152 = vld [vmem:[%s1] sm:$0x1]
    %v154 = vlaneseq
    %v155 = vshrl.u32 %v154, 7
    %v156 = vsub.s32 0, %v155
    %v157 = vrot.slane %v152, %v156
    %v159 = vmul.f32 %v150, %v157
    %v160 = vmul.f32 %v151, %v157
    %v161 = vld [vmem:[#allocation6] sm:$0xff]
    %v162 = vld [vmem:[#allocation6 + $0x8] sm:$0xff]
    %v163 = vld [vmem:[#allocation6 + $0x10] sm:$0xff]
    %v164 = vld [vmem:[#allocation6 + $0x18] sm:$0xff]
    %v165 = vld [vmem:[%s3] sm:$0x1]
    %v167 = vlaneseq
    %v168 = vshrl.u32 %v167, 7
    %v169 = vsub.s32 0, %v168
    %v170 = vrot.slane %v165, %v169
    %v173 = vsel %vm136, %v159, 0
    %v176 = vsel %vm136, %v160, 0
    %178 = vmatprep.subr.mxu0 0.0
    %179 = vmatpush1.msra.mxu0 %v161
    %180 = vmatprep.subr.mxu0 0.0
    %181 = vmatpush1.msra.mxu0 %v162
    %182 = vmatprep.subr.mxu0 0.0
    %183 = vmatpush1.msra.mxu0 %v163
    %184 = vmatprep.subr.mxu0 0.0
    %185 = vmatpush1.msra.mxu0 %v164
    %186 = vmatprep.subr.mxu0 0.0
    %187 = vmatpush1.msra.mxu0 0.0
    %188 = vmatprep.subr.mxu0 0.0
    %189 = vmatpush1.msra.mxu0 0.0
    %190 = vmatprep.subr.mxu0 0.0
    %191 = vmatpush1.msra.mxu0 0.0
    %192 = vmatprep.subr.mxu0 0.0
    %193 = vmatpush1.msra.mxu0 0.0
    %194 = vmatprep.subr.mxu0 0.0
    %195 = vmatpush1.msra.mxu0 0.0
    %196 = vmatprep.subr.mxu0 0.0
    %197 = vmatpush1.msra.mxu0 0.0
    %198 = vmatprep.subr.mxu0 0.0
    %199 = vmatpush1.msra.mxu0 0.0
    %200 = vmatprep.subr.mxu0 0.0
    %201 = vmatpush1.msra.mxu0 0.0
    %202 = vmatprep.subr.mxu0 0.0
    %203 = vmatpush1.msra.mxu0 0.0
    %204 = vmatprep.subr.mxu0 0.0
    %205 = vmatpush1.msra.mxu0 0.0
    %206 = vmatprep.subr.mxu0 0.0
    %207 = vmatpush1.msra.mxu0 0.0
    %208 = vmatprep.subr.mxu0 0.0
    %209 = vmatpush1.msra.mxu0 0.0
    %210 = vmatprep.subr.mxu0 0.0
    %211 = vmatpush1.msra.mxu0 0.0
    %212 = vmatprep.subr.mxu0 0.0
    %213 = vmatpush1.msra.mxu0 0.0
    %214 = vmatprep.subr.mxu0 0.0
    %215 = vmatpush1.msra.mxu0 0.0
    %216 = vmatprep.subr.mxu0 0.0
    %217 = vmatpush1.msra.mxu0 0.0
    %218 = vmatprep.subr.mxu0 0.0
    %219 = vmatpush1.msra.mxu0 0.0
    %220 = vmatprep.subr.mxu0 0.0
    %221 = vmatpush1.msra.mxu0 0.0
    %222 = vmatprep.subr.mxu0 0.0
    %223 = vmatpush1.msra.mxu0 0.0
    %224 = vmatprep.subr.mxu0 0.0
    %225 = vmatpush1.msra.mxu0 0.0
    %226 = vmatprep.subr.mxu0 0.0
    %227 = vmatpush1.msra.mxu0 0.0
    %228 = vmatprep.subr.mxu0 0.0
    %229 = vmatpush1.msra.mxu0 0.0
    %230 = vmatprep.subr.mxu0 0.0
    %231 = vmatpush1.msra.mxu0 0.0
    %232 = vmatprep.subr.mxu0 0.0
    %233 = vmatpush1.msra.mxu0 0.0
    %234 = vmatprep.subr.mxu0 0.0
    %235 = vmatpush1.msra.mxu0 0.0
    %236 = vmatprep.subr.mxu0 0.0
    %237 = vmatpush1.msra.mxu0 0.0
    %238 = vmatprep.subr.mxu0 0.0
    %239 = vmatpush1.msra.mxu0 0.0
    %240 = vmatprep.subr.mxu0 0.0
    %241 = vmatpush1.msra.mxu0 0.0
    %242 = vmatprep.mubr.f32.mxu0 0.0
    %243 = vmatmul.mubr.f32.gmra.mrb[0].mxu0 %v173
    %v244 = vpop.f32.mrb[0].mxu0
    %v245 = vadd.f32 %v170, %v244
    %v246 = vpop.f32.mrb[0].mxu0
    %247 = vmatprep.mubr.f32.mxu0 0.0
    %248 = vmatmul.mubr.f32.gmra.mrb[0].mxu0 %v176
    %v249 = vpop.f32.mrb[0].mxu0
    %v250 = vadd.f32 %v170, %v249
    %v251 = vpop.f32.mrb[0].mxu0
    %252 = vdwg.mxu0
    %v253 = vld [vmem:[%s8] sm:$0xff]
    %v254 = vld [vmem:[%s8 + $0x8] sm:$0xff]
    %v255 = vld [vmem:[%s9] sm:$0xff]
    %v256 = vld [vmem:[%s9 + $0x8] sm:$0xff]
    %v257 = vld [vmem:[#allocation14] sm:$0xff]
    %v258 = vld [vmem:[#allocation14 + $0x8] sm:$0xff]
    %v259 = vmul.f32 %v245, %v253
    %v260 = vmul.f32 %v250, %v254
    %263 = vrot.lane.b32.xlu0 %v255, 16
    %v264 = vpop.permute.xlu0 %263
    %265 = vrot.lane.b32.xlu0 %v256, 16
    %v266 = vpop.permute.xlu0 %265
    %v269 = vmul.f32 %v245, %v264
    %v270 = vmul.f32 %v250, %v266
    %273 = vrot.lane.b32.xlu0 %v269, 112
    %v274 = vpop.permute.xlu0 %273
    %275 = vrot.lane.b32.xlu0 %v270, 112
    %v276 = vpop.permute.xlu0 %275
    %v279 = vsub.f32 %v259, %v274
    %v280 = vsub.f32 %v260, %v276
    %283 = vrot.lane.b32.xlu0 %v253, 16
    %v284 = vpop.permute.xlu0 %283
    %285 = vrot.lane.b32.xlu0 %v254, 16
    %v286 = vpop.permute.xlu0 %285
    %v289 = vmul.f32 %v245, %v284
    %v290 = vmul.f32 %v250, %v286
    %v291 = vmul.f32 %v245, %v255
    %v292 = vmul.f32 %v250, %v256
    %295 = vrot.lane.b32.xlu0 %v291, 16
    %v296 = vpop.permute.xlu0 %295
    %297 = vrot.lane.b32.xlu0 %v292, 16
    %v298 = vpop.permute.xlu0 %297
    %v301 = vadd.f32 %v289, %v296
    %v302 = vadd.f32 %v290, %v298
    %303 = vrot.lane.b32.xlu0 %v253, 32
    %v304 = vpop.permute.xlu0 %303
    %305 = vrot.lane.b32.xlu0 %v254, 32
    %v306 = vpop.permute.xlu0 %305
    %v309 = vmul.f32 %v245, %v304
    %v310 = vmul.f32 %v250, %v306
    %311 = vrot.lane.b32.xlu0 %v255, 48
    %v312 = vpop.permute.xlu0 %311
    %313 = vrot.lane.b32.xlu0 %v256, 48
    %v314 = vpop.permute.xlu0 %313
    %v317 = vmul.f32 %v245, %v312
    %v318 = vmul.f32 %v250, %v314
    %321 = vrot.lane.b32.xlu0 %v317, 112
    %v322 = vpop.permute.xlu0 %321
    %323 = vrot.lane.b32.xlu0 %v318, 112
    %v324 = vpop.permute.xlu0 %323
    %v327 = vsub.f32 %v309, %v322
    %v328 = vsub.f32 %v310, %v324
    %329 = vrot.lane.b32.xlu0 %v253, 48
    %v330 = vpop.permute.xlu0 %329
    %331 = vrot.lane.b32.xlu0 %v254, 48
    %v332 = vpop.permute.xlu0 %331
    %v335 = vmul.f32 %v245, %v330
    %v336 = vmul.f32 %v250, %v332
    %337 = vrot.lane.b32.xlu0 %v255, 32
    %v338 = vpop.permute.xlu0 %337
    %339 = vrot.lane.b32.xlu0 %v256, 32
    %v340 = vpop.permute.xlu0 %339
    %v343 = vmul.f32 %v245, %v338
    %v344 = vmul.f32 %v250, %v340
    %347 = vrot.lane.b32.xlu0 %v343, 16
    %v348 = vpop.permute.xlu0 %347
    %349 = vrot.lane.b32.xlu0 %v344, 16
    %v350 = vpop.permute.xlu0 %349
    %v353 = vadd.f32 %v335, %v348
    %v354 = vadd.f32 %v336, %v350
    %357 = vrot.lane.b32.xlu0 %v301, 112
    %v358 = vpop.permute.xlu0 %357
    %359 = vrot.lane.b32.xlu0 %v302, 112
    %v360 = vpop.permute.xlu0 %359
    %363 = vrot.lane.b32.xlu0 %v353, 80
    %v364 = vpop.permute.xlu0 %363
    %365 = vrot.lane.b32.xlu0 %v354, 80
    %v366 = vpop.permute.xlu0 %365
    %vm367 = vcmask 31744
    %v368 = vsel %vm367, %v358, 0
    %v370 = vsel %vm367, %v360, 0
    %v372 = vsel %vm367, %v364, 0
    %v374 = vsel %vm367, %v366, 0
    %376 = vmatprep.subr.mxu0 0.0
    %377 = vmatpush1.xpose.msra.mxu0 %v372
    %378 = vmatprep.subr.mxu0 0.0
    %379 = vmatpush1.xpose.msra.mxu0 %v374
    %380 = vmatprep.subr.mxu0 0.0
    %381 = vmatpush1.xpose.msra.mxu0 0.0
    %382 = vmatprep.subr.mxu0 0.0
    %383 = vmatpush1.xpose.msra.mxu0 0.0
    %384 = vmatprep.subr.mxu0 0.0
    %385 = vmatpush1.xpose.msra.mxu0 0.0
    %386 = vmatprep.subr.mxu0 0.0
    %387 = vmatpush1.xpose.msra.mxu0 0.0
    %388 = vmatprep.subr.mxu0 0.0
    %389 = vmatpush1.xpose.msra.mxu0 0.0
    %390 = vmatprep.subr.mxu0 0.0
    %391 = vmatpush1.xpose.msra.mxu0 0.0
    %392 = vmatprep.subr.mxu0 0.0
    %393 = vmatpush1.xpose.msra.mxu0 0.0
    %394 = vmatprep.subr.mxu0 0.0
    %395 = vmatpush1.xpose.msra.mxu0 0.0
    %396 = vmatprep.subr.mxu0 0.0
    %397 = vmatpush1.xpose.msra.mxu0 0.0
    %398 = vmatprep.subr.mxu0 0.0
    %399 = vmatpush1.xpose.msra.mxu0 0.0
    %400 = vmatprep.subr.mxu0 0.0
    %401 = vmatpush1.xpose.msra.mxu0 0.0
    %402 = vmatprep.subr.mxu0 0.0
    %403 = vmatpush1.xpose.msra.mxu0 0.0
    %404 = vmatprep.subr.mxu0 0.0
    %405 = vmatpush1.xpose.msra.mxu0 0.0
    %406 = vmatprep.subr.mxu0 0.0
    %407 = vmatpush1.xpose.msra.mxu0 0.0
    %408 = vmatprep.subr.mxu0 0.0
    %409 = vmatpush1.xpose.msra.mxu0 0.0
    %410 = vmatprep.subr.mxu0 0.0
    %411 = vmatpush1.xpose.msra.mxu0 0.0
    %412 = vmatprep.subr.mxu0 0.0
    %413 = vmatpush1.xpose.msra.mxu0 0.0
    %414 = vmatprep.subr.mxu0 0.0
    %415 = vmatpush1.xpose.msra.mxu0 0.0
    %416 = vmatprep.subr.mxu0 0.0
    %417 = vmatpush1.xpose.msra.mxu0 0.0
    %418 = vmatprep.subr.mxu0 0.0
    %419 = vmatpush1.xpose.msra.mxu0 0.0
    %420 = vmatprep.subr.mxu0 0.0
    %421 = vmatpush1.xpose.msra.mxu0 0.0
    %422 = vmatprep.subr.mxu0 0.0
    %423 = vmatpush1.xpose.msra.mxu0 0.0
    %424 = vmatprep.subr.mxu0 0.0
    %425 = vmatpush1.xpose.msra.mxu0 0.0
    %426 = vmatprep.subr.mxu0 0.0
    %427 = vmatpush1.xpose.msra.mxu0 0.0
    %428 = vmatprep.subr.mxu0 0.0
    %429 = vmatpush1.xpose.msra.mxu0 0.0
    %430 = vmatprep.subr.mxu0 0.0
    %431 = vmatpush1.xpose.msra.mxu0 0.0
    %432 = vmatprep.subr.mxu0 0.0
    %433 = vmatpush1.xpose.msra.mxu0 0.0
    %434 = vmatprep.subr.mxu0 0.0
    %435 = vmatpush1.xpose.msra.mxu0 0.0
    %436 = vmatprep.subr.mxu0 0.0
    %437 = vmatpush1.xpose.msra.mxu0 0.0
    %438 = vmatprep.subr.mxu0 0.0
    %439 = vmatpush1.xpose.msra.mxu0 0.0
    %440 = vmatprep.mubr.f32.mxu0 0.0
    %441 = vmatmul.mubr.f32.gmra.mrb[0].mxu0 %v368
    %v442 = vpop.f32.mrb[0].mxu0
    %v443 = vadd.f32 0.0, %v442
    %v444 = vpop.f32.mrb[0].mxu0
    %445 = vmatprep.mubr.f32.mxu0 0.0
    %446 = vmatmul.mubr.f32.gmra.mrb[0].mxu0 %v370
    %v447 = vpop.f32.mrb[0].mxu0
    %v448 = vadd.f32 0.0, %v447
    %v449 = vpop.f32.mrb[0].mxu0
    %450 = vdwg.mxu0
    %453 = vrot.lane.b32.xlu0 %v327, 96
    %v454 = vpop.permute.xlu0 %453
    %455 = vrot.lane.b32.xlu0 %v328, 96
    %v456 = vpop.permute.xlu0 %455
    %v458 = vsel %vm367, %v279, 0
    %v461 = vsel %vm367, %v280, 0
    %v463 = vsel %vm367, %v454, 0
    %v465 = vsel %vm367, %v456, 0
    %467 = vmatprep.subr.mxu0 0.0
    %468 = vmatpush1.xpose.msra.mxu0 %v463
    %469 = vmatprep.subr.mxu0 0.0
    %470 = vmatpush1.xpose.msra.mxu0 %v465
    %471 = vmatprep.subr.mxu0 0.0
    %472 = vmatpush1.xpose.msra.mxu0 0.0
    %473 = vmatprep.subr.mxu0 0.0
    %474 = vmatpush1.xpose.msra.mxu0 0.0
    %475 = vmatprep.subr.mxu0 0.0
    %476 = vmatpush1.xpose.msra.mxu0 0.0
    %477 = vmatprep.subr.mxu0 0.0
    %478 = vmatpush1.xpose.msra.mxu0 0.0
    %479 = vmatprep.subr.mxu0 0.0
    %480 = vmatpush1.xpose.msra.mxu0 0.0
    %481 = vmatprep.subr.mxu0 0.0
    %482 = vmatpush1.xpose.msra.mxu0 0.0
    %483 = vmatprep.subr.mxu0 0.0
    %484 = vmatpush1.xpose.msra.mxu0 0.0
    %485 = vmatprep.subr.mxu0 0.0
    %486 = vmatpush1.xpose.msra.mxu0 0.0
    %487 = vmatprep.subr.mxu0 0.0
    %488 = vmatpush1.xpose.msra.mxu0 0.0
    %489 = vmatprep.subr.mxu0 0.0
    %490 = vmatpush1.xpose.msra.mxu0 0.0
    %491 = vmatprep.subr.mxu0 0.0
    %492 = vmatpush1.xpose.msra.mxu0 0.0
    %493 = vmatprep.subr.mxu0 0.0
    %494 = vmatpush1.xpose.msra.mxu0 0.0
    %495 = vmatprep.subr.mxu0 0.0
    %496 = vmatpush1.xpose.msra.mxu0 0.0
    %497 = vmatprep.subr.mxu0 0.0
    %498 = vmatpush1.xpose.msra.mxu0 0.0
    %499 = vmatprep.subr.mxu0 0.0
    %500 = vmatpush1.xpose.msra.mxu0 0.0
    %501 = vmatprep.subr.mxu0 0.0
    %502 = vmatpush1.xpose.msra.mxu0 0.0
    %503 = vmatprep.subr.mxu0 0.0
    %504 = vmatpush1.xpose.msra.mxu0 0.0
    %505 = vmatprep.subr.mxu0 0.0
    %506 = vmatpush1.xpose.msra.mxu0 0.0
    %507 = vmatprep.subr.mxu0 0.0
    %508 = vmatpush1.xpose.msra.mxu0 0.0
    %509 = vmatprep.subr.mxu0 0.0
    %510 = vmatpush1.xpose.msra.mxu0 0.0
    %511 = vmatprep.subr.mxu0 0.0
    %512 = vmatpush1.xpose.msra.mxu0 0.0
    %513 = vmatprep.subr.mxu0 0.0
    %514 = vmatpush1.xpose.msra.mxu0 0.0
    %515 = vmatprep.subr.mxu0 0.0
    %516 = vmatpush1.xpose.msra.mxu0 0.0
    %517 = vmatprep.subr.mxu0 0.0
    %518 = vmatpush1.xpose.msra.mxu0 0.0
    %519 = vmatprep.subr.mxu0 0.0
    %520 = vmatpush1.xpose.msra.mxu0 0.0
    %521 = vmatprep.subr.mxu0 0.0
    %522 = vmatpush1.xpose.msra.mxu0 0.0
    %523 = vmatprep.subr.mxu0 0.0
    %524 = vmatpush1.xpose.msra.mxu0 0.0
    %525 = vmatprep.subr.mxu0 0.0
    %526 = vmatpush1.xpose.msra.mxu0 0.0
    %527 = vmatprep.subr.mxu0 0.0
    %528 = vmatpush1.xpose.msra.mxu0 0.0
    %529 = vmatprep.subr.mxu0 0.0
    %530 = vmatpush1.xpose.msra.mxu0 0.0
    %531 = vmatprep.mubr.f32.mxu0 0.0
    %532 = vmatmul.mubr.f32.gmra.mrb[0].mxu0 %v458
    %v533 = vpop.f32.mrb[0].mxu0
    %v534 = vadd.f32 %v443, %v533
    %v535 = vpop.f32.mrb[0].mxu0
    %536 = vmatprep.mubr.f32.mxu0 0.0
    %537 = vmatmul.mubr.f32.gmra.mrb[0].mxu0 %v461
    %v538 = vpop.f32.mrb[0].mxu0
    %v539 = vadd.f32 %v448, %v538
    %v540 = vpop.f32.mrb[0].mxu0
    %541 = vdwg.mxu0
    %v542 = vadd.f32 %v534, %v257
    %v543 = vadd.f32 %v539, %v258
    %vm544 = vcmask 130048
    %v545 = vsel %vm544, %v542, -inf
    %546 = vmax.xlane.f32.xlu0 %v545
    %v547 = vpop.xlane.xlu0 %546
    %v548 = vsel %vm544, %v543, -inf
    %549 = vmax.xlane.f32.xlu0 %v548
    %v550 = vpop.xlane.xlu0 %549
    %v551 = vsub.f32 %v542, %v547
    %v552 = vsub.f32 %v543, %v550
    %v553 = vmul.f32 %v551, 1.442695
    %v554 = vpow.pop %v553
    %v555 = vmul.f32 %v552, 1.442695
    %v556 = vpow.pop %v555
    %v557 = vsel %vm544, %v554, 0.0
    %558 = vadd.xlane.f32.xlu0 %v557
    %v559 = vpop.xlane.xlu0 %558
    %v560 = vsel %vm544, %v556, 0.0
    %561 = vadd.xlane.f32.xlu0 %v560
    %v562 = vpop.xlane.xlu0 %561
    %v563 = vrcp.pop %v559
    %v564 = vrcp.pop %v562
    %v565 = vmul.f32 %v554, %v563
    %v566 = vmul.f32 %v556, %v564
    %569 = vrot.lane.b32.xlu0 %v245, 64
    %v570 = vpop.permute.xlu0 %569
    %571 = vrot.lane.b32.xlu0 %v250, 64
    %v572 = vpop.permute.xlu0 %571
    %v576 = vsel %vm544, %v565, 0
    %v579 = vsel %vm544, %v566, 0
    %581 = vmatprep.subr.mxu0 0.0
    %582 = vmatpush1.msra.mxu0 %v570
    %583 = vmatprep.subr.mxu0 0.0
    %584 = vmatpush1.msra.mxu0 %v572
    %585 = vmatprep.subr.mxu0 0.0
    %586 = vmatpush1.msra.mxu0 0.0
    %587 = vmatprep.subr.mxu0 0.0
    %588 = vmatpush1.msra.mxu0 0.0
    %589 = vmatprep.subr.mxu0 0.0
    %590 = vmatpush1.msra.mxu0 0.0
    %591 = vmatprep.subr.mxu0 0.0
    %592 = vmatpush1.msra.mxu0 0.0
    %593 = vmatprep.subr.mxu0 0.0
    %594 = vmatpush1.msra.mxu0 0.0
    %595 = vmatprep.subr.mxu0 0.0
    %596 = vmatpush1.msra.mxu0 0.0
    %597 = vmatprep.subr.mxu0 0.0
    %598 = vmatpush1.msra.mxu0 0.0
    %599 = vmatprep.subr.mxu0 0.0
    %600 = vmatpush1.msra.mxu0 0.0
    %601 = vmatprep.subr.mxu0 0.0
    %602 = vmatpush1.msra.mxu0 0.0
    %603 = vmatprep.subr.mxu0 0.0
    %604 = vmatpush1.msra.mxu0 0.0
    %605 = vmatprep.subr.mxu0 0.0
    %606 = vmatpush1.msra.mxu0 0.0
    %607 = vmatprep.subr.mxu0 0.0
    %608 = vmatpush1.msra.mxu0 0.0
    %609 = vmatprep.subr.mxu0 0.0
    %610 = vmatpush1.msra.mxu0 0.0
    %611 = vmatprep.subr.mxu0 0.0
    %612 = vmatpush1.msra.mxu0 0.0
    %613 = vmatprep.subr.mxu0 0.0
    %614 = vmatpush1.msra.mxu0 0.0
    %615 = vmatprep.subr.mxu0 0.0
    %616 = vmatpush1.msra.mxu0 0.0
    %617 = vmatprep.subr.mxu0 0.0
    %618 = vmatpush1.msra.mxu0 0.0
    %619 = vmatprep.subr.mxu0 0.0
    %620 = vmatpush1.msra.mxu0 0.0
    %621 = vmatprep.subr.mxu0 0.0
    %622 = vmatpush1.msra.mxu0 0.0
    %623 = vmatprep.subr.mxu0 0.0
    %624 = vmatpush1.msra.mxu0 0.0
    %625 = vmatprep.subr.mxu0 0.0
    %626 = vmatpush1.msra.mxu0 0.0
    %627 = vmatprep.subr.mxu0 0.0
    %628 = vmatpush1.msra.mxu0 0.0
    %629 = vmatprep.subr.mxu0 0.0
    %630 = vmatpush1.msra.mxu0 0.0
    %631 = vmatprep.subr.mxu0 0.0
    %632 = vmatpush1.msra.mxu0 0.0
    %633 = vmatprep.subr.mxu0 0.0
    %634 = vmatpush1.msra.mxu0 0.0
    %635 = vmatprep.subr.mxu0 0.0
    %636 = vmatpush1.msra.mxu0 0.0
    %637 = vmatprep.subr.mxu0 0.0
    %638 = vmatpush1.msra.mxu0 0.0
    %639 = vmatprep.subr.mxu0 0.0
    %640 = vmatpush1.msra.mxu0 0.0
    %641 = vmatprep.subr.mxu0 0.0
    %642 = vmatpush1.msra.mxu0 0.0
    %643 = vmatprep.subr.mxu0 0.0
    %644 = vmatpush1.msra.mxu0 0.0
    %645 = vmatprep.mubr.f32.mxu0 0.0
    %646 = vmatmul.mubr.f32.gmra.mrb[0].mxu0 %v576
    %v647 = vpop.f32.mrb[0].mxu0
    %v648 = vadd.f32 0.0, %v647
    %v649 = vpop.f32.mrb[0].mxu0
    %650 = vmatprep.mubr.f32.mxu0 0.0
    %651 = vmatmul.mubr.f32.gmra.mrb[0].mxu0 %v579
    %v652 = vpop.f32.mrb[0].mxu0
    %v653 = vadd.f32 0.0, %v652
    %v654 = vpop.f32.mrb[0].mxu0
    %655 = vdwg.mxu0
    %vm656 = vcmask 64512
    %657 = vst.msk [vmem:[#allocation2] sm:$0xff] %vm656, %v648
    %658 = vst.msk [vmem:[#allocation2 + $0x8] sm:$0xff] %vm656, %v653
    %659 = vrot.lane.b32.xlu0 %v301, 108
    %v660 = vpop.permute.xlu0 %659
    %661 = vrot.lane.b32.xlu0 %v302, 108
    %v662 = vpop.permute.xlu0 %661
    %663 = vrot.lane.b32.xlu0 %v353, 76
    %v664 = vpop.permute.xlu0 %663
    %665 = vrot.lane.b32.xlu0 %v354, 76
    %v666 = vpop.permute.xlu0 %665
    %v667 = vsel %vm367, %v660, 0
    %v669 = vsel %vm367, %v662, 0
    %v671 = vsel %vm367, %v664, 0
    %v673 = vsel %vm367, %v666, 0
    %675 = vmatprep.subr.mxu0 0.0
    %676 = vmatpush1.xpose.msra.mxu0 %v671
    %677 = vmatprep.subr.mxu0 0.0
    %678 = vmatpush1.xpose.msra.mxu0 %v673
    %679 = vmatprep.subr.mxu0 0.0
    %680 = vmatpush1.xpose.msra.mxu0 0.0
    %681 = vmatprep.subr.mxu0 0.0
    %682 = vmatpush1.xpose.msra.mxu0 0.0
    %683 = vmatprep.subr.mxu0 0.0
    %684 = vmatpush1.xpose.msra.mxu0 0.0
    %685 = vmatprep.subr.mxu0 0.0
    %686 = vmatpush1.xpose.msra.mxu0 0.0
    %687 = vmatprep.subr.mxu0 0.0
    %688 = vmatpush1.xpose.msra.mxu0 0.0
    %689 = vmatprep.subr.mxu0 0.0
    %690 = vmatpush1.xpose.msra.mxu0 0.0
    %691 = vmatprep.subr.mxu0 0.0
    %692 = vmatpush1.xpose.msra.mxu0 0.0
    %693 = vmatprep.subr.mxu0 0.0
    %694 = vmatpush1.xpose.msra.mxu0 0.0
    %695 = vmatprep.subr.mxu0 0.0
    %696 = vmatpush1.xpose.msra.mxu0 0.0
    %697 = vmatprep.subr.mxu0 0.0
    %698 = vmatpush1.xpose.msra.mxu0 0.0
    %699 = vmatprep.subr.mxu0 0.0
    %700 = vmatpush1.xpose.msra.mxu0 0.0
    %701 = vmatprep.subr.mxu0 0.0
    %702 = vmatpush1.xpose.msra.mxu0 0.0
    %703 = vmatprep.subr.mxu0 0.0
    %704 = vmatpush1.xpose.msra.mxu0 0.0
    %705 = vmatprep.subr.mxu0 0.0
    %706 = vmatpush1.xpose.msra.mxu0 0.0
    %707 = vmatprep.subr.mxu0 0.0
    %708 = vmatpush1.xpose.msra.mxu0 0.0
    %709 = vmatprep.subr.mxu0 0.0
    %710 = vmatpush1.xpose.msra.mxu0 0.0
    %711 = vmatprep.subr.mxu0 0.0
    %712 = vmatpush1.xpose.msra.mxu0 0.0
    %713 = vmatprep.subr.mxu0 0.0
    %714 = vmatpush1.xpose.msra.mxu0 0.0
    %715 = vmatprep.subr.mxu0 0.0
    %716 = vmatpush1.xpose.msra.mxu0 0.0
    %717 = vmatprep.subr.mxu0 0.0
    %718 = vmatpush1.xpose.msra.mxu0 0.0
    %719 = vmatprep.subr.mxu0 0.0
    %720 = vmatpush1.xpose.msra.mxu0 0.0
    %721 = vmatprep.subr.mxu0 0.0
    %722 = vmatpush1.xpose.msra.mxu0 0.0
    %723 = vmatprep.subr.mxu0 0.0
    %724 = vmatpush1.xpose.msra.mxu0 0.0
    %725 = vmatprep.subr.mxu0 0.0
    %726 = vmatpush1.xpose.msra.mxu0 0.0
    %727 = vmatprep.subr.mxu0 0.0
    %728 = vmatpush1.xpose.msra.mxu0 0.0
    %729 = vmatprep.subr.mxu0 0.0
    %730 = vmatpush1.xpose.msra.mxu0 0.0
    %731 = vmatprep.subr.mxu0 0.0
    %732 = vmatpush1.xpose.msra.mxu0 0.0
    %733 = vmatprep.subr.mxu0 0.0
    %734 = vmatpush1.xpose.msra.mxu0 0.0
    %735 = vmatprep.subr.mxu0 0.0
    %736 = vmatpush1.xpose.msra.mxu0 0.0
    %737 = vmatprep.subr.mxu0 0.0
    %738 = vmatpush1.xpose.msra.mxu0 0.0
    %739 = vmatprep.mubr.f32.mxu0 0.0
    %740 = vmatmul.mubr.f32.gmra.mrb[0].mxu0 %v667
    %v741 = vpop.f32.mrb[0].mxu0
    %v742 = vadd.f32 0.0, %v741
    %v743 = vpop.f32.mrb[0].mxu0
    %744 = vmatprep.mubr.f32.mxu0 0.0
    %745 = vmatmul.mubr.f32.gmra.mrb[0].mxu0 %v669
    %v746 = vpop.f32.mrb[0].mxu0
    %v747 = vadd.f32 0.0, %v746
    %v748 = vpop.f32.mrb[0].mxu0
    %749 = vdwg.mxu0
    %750 = vrot.lane.b32.xlu0 %v279, 124
    %v751 = vpop.permute.xlu0 %750
    %752 = vrot.lane.b32.xlu0 %v280, 124
    %v753 = vpop.permute.xlu0 %752
    %754 = vrot.lane.b32.xlu0 %v327, 92
    %v755 = vpop.permute.xlu0 %754
    %756 = vrot.lane.b32.xlu0 %v328, 92
    %v757 = vpop.permute.xlu0 %756
    %v758 = vsel %vm367, %v751, 0
    %v760 = vsel %vm367, %v753, 0
    %v762 = vsel %vm367, %v755, 0
    %v764 = vsel %vm367, %v757, 0
    %766 = vmatprep.subr.mxu0 0.0
    %767 = vmatpush1.xpose.msra.mxu0 %v762
    %768 = vmatprep.subr.mxu0 0.0
    %769 = vmatpush1.xpose.msra.mxu0 %v764
    %770 = vmatprep.subr.mxu0 0.0
    %771 = vmatpush1.xpose.msra.mxu0 0.0
    %772 = vmatprep.subr.mxu0 0.0
    %773 = vmatpush1.xpose.msra.mxu0 0.0
    %774 = vmatprep.subr.mxu0 0.0
    %775 = vmatpush1.xpose.msra.mxu0 0.0
    %776 = vmatprep.subr.mxu0 0.0
    %777 = vmatpush1.xpose.msra.mxu0 0.0
    %778 = vmatprep.subr.mxu0 0.0
    %779 = vmatpush1.xpose.msra.mxu0 0.0
    %780 = vmatprep.subr.mxu0 0.0
    %781 = vmatpush1.xpose.msra.mxu0 0.0
    %782 = vmatprep.subr.mxu0 0.0
    %783 = vmatpush1.xpose.msra.mxu0 0.0
    %784 = vmatprep.subr.mxu0 0.0
    %785 = vmatpush1.xpose.msra.mxu0 0.0
    %786 = vmatprep.subr.mxu0 0.0
    %787 = vmatpush1.xpose.msra.mxu0 0.0
    %788 = vmatprep.subr.mxu0 0.0
    %789 = vmatpush1.xpose.msra.mxu0 0.0
    %790 = vmatprep.subr.mxu0 0.0
    %791 = vmatpush1.xpose.msra.mxu0 0.0
    %792 = vmatprep.subr.mxu0 0.0
    %793 = vmatpush1.xpose.msra.mxu0 0.0
    %794 = vmatprep.subr.mxu0 0.0
    %795 = vmatpush1.xpose.msra.mxu0 0.0
    %796 = vmatprep.subr.mxu0 0.0
    %797 = vmatpush1.xpose.msra.mxu0 0.0
    %798 = vmatprep.subr.mxu0 0.0
    %799 = vmatpush1.xpose.msra.mxu0 0.0
    %800 = vmatprep.subr.mxu0 0.0
    %801 = vmatpush1.xpose.msra.mxu0 0.0
    %802 = vmatprep.subr.mxu0 0.0
    %803 = vmatpush1.xpose.msra.mxu0 0.0
    %804 = vmatprep.subr.mxu0 0.0
    %805 = vmatpush1.xpose.msra.mxu0 0.0
    %806 = vmatprep.subr.mxu0 0.0
    %807 = vmatpush1.xpose.msra.mxu0 0.0
    %808 = vmatprep.subr.mxu0 0.0
    %809 = vmatpush1.xpose.msra.mxu0 0.0
    %810 = vmatprep.subr.mxu0 0.0
    %811 = vmatpush1.xpose.msra.mxu0 0.0
    %812 = vmatprep.subr.mxu0 0.0
    %813 = vmatpush1.xpose.msra.mxu0 0.0
    %814 = vmatprep.subr.mxu0 0.0
    %815 = vmatpush1.xpose.msra.mxu0 0.0
    %816 = vmatprep.subr.mxu0 0.0
    %817 = vmatpush1.xpose.msra.mxu0 0.0
    %818 = vmatprep.subr.mxu0 0.0
    %819 = vmatpush1.xpose.msra.mxu0 0.0
    %820 = vmatprep.subr.mxu0 0.0
    %821 = vmatpush1.xpose.msra.mxu0 0.0
    %822 = vmatprep.subr.mxu0 0.0
    %823 = vmatpush1.xpose.msra.mxu0 0.0
    %824 = vmatprep.subr.mxu0 0.0
    %825 = vmatpush1.xpose.msra.mxu0 0.0
    %826 = vmatprep.subr.mxu0 0.0
    %827 = vmatpush1.xpose.msra.mxu0 0.0
    %828 = vmatprep.subr.mxu0 0.0
    %829 = vmatpush1.xpose.msra.mxu0 0.0
    %830 = vmatprep.mubr.f32.mxu0 0.0
    %831 = vmatmul.mubr.f32.gmra.mrb[0].mxu0 %v758
    %v832 = vpop.f32.mrb[0].mxu0
    %v833 = vadd.f32 %v742, %v832
    %v834 = vpop.f32.mrb[0].mxu0
    %835 = vmatprep.mubr.f32.mxu0 0.0
    %836 = vmatmul.mubr.f32.gmra.mrb[0].mxu0 %v760
    %v837 = vpop.f32.mrb[0].mxu0
    %v838 = vadd.f32 %v747, %v837
    %v839 = vpop.f32.mrb[0].mxu0
    %840 = vdwg.mxu0
    %v841 = vadd.f32 %v833, %v257
    %v842 = vadd.f32 %v838, %v258
    %v843 = vsel %vm544, %v841, -inf
    %844 = vmax.xlane.f32.xlu0 %v843
    %v845 = vpop.xlane.xlu0 %844
    %v846 = vsel %vm544, %v842, -inf
    %847 = vmax.xlane.f32.xlu0 %v846
    %v848 = vpop.xlane.xlu0 %847
    %v849 = vsub.f32 %v841, %v845
    %v850 = vsub.f32 %v842, %v848
    %v851 = vmul.f32 %v849, 1.442695
    %v852 = vpow.pop %v851
    %v853 = vmul.f32 %v850, 1.442695
    %v854 = vpow.pop %v853
    %v855 = vsel %vm544, %v852, 0.0
    %856 = vadd.xlane.f32.xlu0 %v855
    %v857 = vpop.xlane.xlu0 %856
    %v858 = vsel %vm544, %v854, 0.0
    %859 = vadd.xlane.f32.xlu0 %v858
    %v860 = vpop.xlane.xlu0 %859
    %v861 = vrcp.pop %v857
    %v862 = vrcp.pop %v860
    %v863 = vmul.f32 %v852, %v861
    %v864 = vmul.f32 %v854, %v862
    %865 = vrot.lane.b32.xlu0 %v245, 56
    %v866 = vpop.permute.xlu0 %865
    %867 = vrot.lane.b32.xlu0 %v250, 56
    %v868 = vpop.permute.xlu0 %867
    %v872 = vsel %vm544, %v863, 0
    %v875 = vsel %vm544, %v864, 0
    %877 = vmatprep.subr.mxu0 0.0
    %878 = vmatpush1.msra.mxu0 %v866
    %879 = vmatprep.subr.mxu0 0.0
    %880 = vmatpush1.msra.mxu0 %v868
    %881 = vmatprep.subr.mxu0 0.0
    %882 = vmatpush1.msra.mxu0 0.0
    %883 = vmatprep.subr.mxu0 0.0
    %884 = vmatpush1.msra.mxu0 0.0
    %885 = vmatprep.subr.mxu0 0.0
    %886 = vmatpush1.msra.mxu0 0.0
    %887 = vmatprep.subr.mxu0 0.0
    %888 = vmatpush1.msra.mxu0 0.0
    %889 = vmatprep.subr.mxu0 0.0
    %890 = vmatpush1.msra.mxu0 0.0
    %891 = vmatprep.subr.mxu0 0.0
    %892 = vmatpush1.msra.mxu0 0.0
    %893 = vmatprep.subr.mxu0 0.0
    %894 = vmatpush1.msra.mxu0 0.0
    %895 = vmatprep.subr.mxu0 0.0
    %896 = vmatpush1.msra.mxu0 0.0
    %897 = vmatprep.subr.mxu0 0.0
    %898 = vmatpush1.msra.mxu0 0.0
    %899 = vmatprep.subr.mxu0 0.0
    %900 = vmatpush1.msra.mxu0 0.0
    %901 = vmatprep.subr.mxu0 0.0
    %902 = vmatpush1.msra.mxu0 0.0
    %903 = vmatprep.subr.mxu0 0.0
    %904 = vmatpush1.msra.mxu0 0.0
    %905 = vmatprep.subr.mxu0 0.0
    %906 = vmatpush1.msra.mxu0 0.0
    %907 = vmatprep.subr.mxu0 0.0
    %908 = vmatpush1.msra.mxu0 0.0
    %909 = vmatprep.subr.mxu0 0.0
    %910 = vmatpush1.msra.mxu0 0.0
    %911 = vmatprep.subr.mxu0 0.0
    %912 = vmatpush1.msra.mxu0 0.0
    %913 = vmatprep.subr.mxu0 0.0
    %914 = vmatpush1.msra.mxu0 0.0
    %915 = vmatprep.subr.mxu0 0.0
    %916 = vmatpush1.msra.mxu0 0.0
    %917 = vmatprep.subr.mxu0 0.0
    %918 = vmatpush1.msra.mxu0 0.0
    %919 = vmatprep.subr.mxu0 0.0
    %920 = vmatpush1.msra.mxu0 0.0
    %921 = vmatprep.subr.mxu0 0.0
    %922 = vmatpush1.msra.mxu0 0.0
    %923 = vmatprep.subr.mxu0 0.0
    %924 = vmatpush1.msra.mxu0 0.0
    %925 = vmatprep.subr.mxu0 0.0
    %926 = vmatpush1.msra.mxu0 0.0
    %927 = vmatprep.subr.mxu0 0.0
    %928 = vmatpush1.msra.mxu0 0.0
    %929 = vmatprep.subr.mxu0 0.0
    %930 = vmatpush1.msra.mxu0 0.0
    %931 = vmatprep.subr.mxu0 0.0
    %932 = vmatpush1.msra.mxu0 0.0
    %933 = vmatprep.subr.mxu0 0.0
    %934 = vmatpush1.msra.mxu0 0.0
    %935 = vmatprep.subr.mxu0 0.0
    %936 = vmatpush1.msra.mxu0 0.0
    %937 = vmatprep.subr.mxu0 0.0
    %938 = vmatpush1.msra.mxu0 0.0
    %939 = vmatprep.subr.mxu0 0.0
    %940 = vmatpush1.msra.mxu0 0.0
    %941 = vmatprep.mubr.f32.mxu0 0.0
    %942 = vmatmul.mubr.f32.gmra.mrb[0].mxu0 %v872
    %v943 = vpop.f32.mrb[0].mxu0
    %v944 = vadd.f32 0.0, %v943
    %v945 = vpop.f32.mrb[0].mxu0
    %946 = vmatprep.mubr.f32.mxu0 0.0
    %947 = vmatmul.mubr.f32.gmra.mrb[0].mxu0 %v875
    %v948 = vpop.f32.mrb[0].mxu0
    %v949 = vadd.f32 0.0, %v948
    %v950 = vpop.f32.mrb[0].mxu0
    %951 = vdwg.mxu0
    %954 = vrot.lane.b32.xlu0 %v944, 8
    %v955 = vpop.permute.xlu0 %954
    %956 = vrot.lane.b32.xlu0 %v949, 8
    %v957 = vpop.permute.xlu0 %956
    %vm960 = vcmask 130112
    %961 = vst.msk [vmem:[#allocation2] sm:$0xff] %vm960, %v955
    %962 = vst.msk [vmem:[#allocation2 + $0x8] sm:$0xff] %vm960, %v957
    %963 = vrot.lane.b32.xlu0 %v301, 104
    %v964 = vpop.permute.xlu0 %963
    %965 = vrot.lane.b32.xlu0 %v302, 104
    %v966 = vpop.permute.xlu0 %965
    %967 = vrot.lane.b32.xlu0 %v353, 72
    %v968 = vpop.permute.xlu0 %967
    %969 = vrot.lane.b32.xlu0 %v354, 72
    %v970 = vpop.permute.xlu0 %969
    %v971 = vsel %vm367, %v964, 0
    %v973 = vsel %vm367, %v966, 0
    %v975 = vsel %vm367, %v968, 0
    %v977 = vsel %vm367, %v970, 0
    %979 = vmatprep.subr.mxu0 0.0
    %980 = vmatpush1.xpose.msra.mxu0 %v975
    %981 = vmatprep.subr.mxu0 0.0
    %982 = vmatpush1.xpose.msra.mxu0 %v977
    %983 = vmatprep.subr.mxu0 0.0
    %984 = vmatpush1.xpose.msra.mxu0 0.0
    %985 = vmatprep.subr.mxu0 0.0
    %986 = vmatpush1.xpose.msra.mxu0 0.0
    %987 = vmatprep.subr.mxu0 0.0
    %988 = vmatpush1.xpose.msra.mxu0 0.0
    %989 = vmatprep.subr.mxu0 0.0
    %990 = vmatpush1.xpose.msra.mxu0 0.0
    %991 = vmatprep.subr.mxu0 0.0
    %992 = vmatpush1.xpose.msra.mxu0 0.0
    %993 = vmatprep.subr.mxu0 0.0
    %994 = vmatpush1.xpose.msra.mxu0 0.0
    %995 = vmatprep.subr.mxu0 0.0
    %996 = vmatpush1.xpose.msra.mxu0 0.0
    %997 = vmatprep.subr.mxu0 0.0
    %998 = vmatpush1.xpose.msra.mxu0 0.0
    %999 = vmatprep.subr.mxu0 0.0
    %1000 = vmatpush1.xpose.msra.mxu0 0.0
    %1001 = vmatprep.subr.mxu0 0.0
    %1002 = vmatpush1.xpose.msra.mxu0 0.0
    %1003 = vmatprep.subr.mxu0 0.0
    %1004 = vmatpush1.xpose.msra.mxu0 0.0
    %1005 = vmatprep.subr.mxu0 0.0
    %1006 = vmatpush1.xpose.msra.mxu0 0.0
    %1007 = vmatprep.subr.mxu0 0.0
    %1008 = vmatpush1.xpose.msra.mxu0 0.0
    %1009 = vmatprep.subr.mxu0 0.0
    %1010 = vmatpush1.xpose.msra.mxu0 0.0
    %1011 = vmatprep.subr.mxu0 0.0
    %1012 = vmatpush1.xpose.msra.mxu0 0.0
    %1013 = vmatprep.subr.mxu0 0.0
    %1014 = vmatpush1.xpose.msra.mxu0 0.0
    %1015 = vmatprep.subr.mxu0 0.0
    %1016 = vmatpush1.xpose.msra.mxu0 0.0
    %1017 = vmatprep.subr.mxu0 0.0
    %1018 = vmatpush1.xpose.msra.mxu0 0.0
    %1019 = vmatprep.subr.mxu0 0.0
    %1020 = vmatpush1.xpose.msra.mxu0 0.0
    %1021 = vmatprep.subr.mxu0 0.0
    %1022 = vmatpush1.xpose.msra.mxu0 0.0
    %1023 = vmatprep.subr.mxu0 0.0
    %1024 = vmatpush1.xpose.msra.mxu0 0.0
    %1025 = vmatprep.subr.mxu0 0.0
    %1026 = vmatpush1.xpose.msra.mxu0 0.0
    %1027 = vmatprep.subr.mxu0 0.0
    %1028 = vmatpush1.xpose.msra.mxu0 0.0
    %1029 = vmatprep.subr.mxu0 0.0
    %1030 = vmatpush1.xpose.msra.mxu0 0.0
    %1031 = vmatprep.subr.mxu0 0.0
    %1032 = vmatpush1.xpose.msra.mxu0 0.0
    %1033 = vmatprep.subr.mxu0 0.0
    %1034 = vmatpush1.xpose.msra.mxu0 0.0
    %1035 = vmatprep.subr.mxu0 0.0
    %1036 = vmatpush1.xpose.msra.mxu0 0.0
    %1037 = vmatprep.subr.mxu0 0.0
    %1038 = vmatpush1.xpose.msra.mxu0 0.0
    %1039 = vmatprep.subr.mxu0 0.0
    %1040 = vmatpush1.xpose.msra.mxu0 0.0
    %1041 = vmatprep.subr.mxu0 0.0
    %1042 = vmatpush1.xpose.msra.mxu0 0.0
    %1043 = vmatprep.mubr.f32.mxu0 0.0
    %1044 = vmatmul.mubr.f32.gmra.mrb[0].mxu0 %v971
    %v1045 = vpop.f32.mrb[0].mxu0
    %v1046 = vadd.f32 0.0, %v1045
    %v1047 = vpop.f32.mrb[0].mxu0
    %1048 = vmatprep.mubr.f32.mxu0 0.0
    %1049 = vmatmul.mubr.f32.gmra.mrb[0].mxu0 %v973
    %v1050 = vpop.f32.mrb[0].mxu0
    %v1051 = vadd.f32 0.0, %v1050
    %v1052 = vpop.f32.mrb[0].mxu0
    %1053 = vdwg.mxu0
    %1054 = vrot.lane.b32.xlu0 %v279, 120
    %v1055 = vpop.permute.xlu0 %1054
    %1056 = vrot.lane.b32.xlu0 %v280, 120
    %v1057 = vpop.permute.xlu0 %1056
    %1058 = vrot.lane.b32.xlu0 %v327, 88
    %v1059 = vpop.permute.xlu0 %1058
    %1060 = vrot.lane.b32.xlu0 %v328, 88
    %v1061 = vpop.permute.xlu0 %1060
    %v1062 = vsel %vm367, %v1055, 0
    %v1064 = vsel %vm367, %v1057, 0
    %v1066 = vsel %vm367, %v1059, 0
    %v1068 = vsel %vm367, %v1061, 0
    %1070 = vmatprep.subr.mxu0 0.0
    %1071 = vmatpush1.xpose.msra.mxu0 %v1066
    %1072 = vmatprep.subr.mxu0 0.0
    %1073 = vmatpush1.xpose.msra.mxu0 %v1068
    %1074 = vmatprep.subr.mxu0 0.0
    %1075 = vmatpush1.xpose.msra.mxu0 0.0
    %1076 = vmatprep.subr.mxu0 0.0
    %1077 = vmatpush1.xpose.msra.mxu0 0.0
    %1078 = vmatprep.subr.mxu0 0.0
    %1079 = vmatpush1.xpose.msra.mxu0 0.0
    %1080 = vmatprep.subr.mxu0 0.0
    %1081 = vmatpush1.xpose.msra.mxu0 0.0
    %1082 = vmatprep.subr.mxu0 0.0
    %1083 = vmatpush1.xpose.msra.mxu0 0.0
    %1084 = vmatprep.subr.mxu0 0.0
    %1085 = vmatpush1.xpose.msra.mxu0 0.0
    %1086 = vmatprep.subr.mxu0 0.0
    %1087 = vmatpush1.xpose.msra.mxu0 0.0
    %1088 = vmatprep.subr.mxu0 0.0
    %1089 = vmatpush1.xpose.msra.mxu0 0.0
    %1090 = vmatprep.subr.mxu0 0.0
    %1091 = vmatpush1.xpose.msra.mxu0 0.0
    %1092 = vmatprep.subr.mxu0 0.0
    %1093 = vmatpush1.xpose.msra.mxu0 0.0
    %1094 = vmatprep.subr.mxu0 0.0
    %1095 = vmatpush1.xpose.msra.mxu0 0.0
    %1096 = vmatprep.subr.mxu0 0.0
    %1097 = vmatpush1.xpose.msra.mxu0 0.0
    %1098 = vmatprep.subr.mxu0 0.0
    %1099 = vmatpush1.xpose.msra.mxu0 0.0
    %1100 = vmatprep.subr.mxu0 0.0
    %1101 = vmatpush1.xpose.msra.mxu0 0.0
    %1102 = vmatprep.subr.mxu0 0.0
    %1103 = vmatpush1.xpose.msra.mxu0 0.0
    %1104 = vmatprep.subr.mxu0 0.0
    %1105 = vmatpush1.xpose.msra.mxu0 0.0
    %1106 = vmatprep.subr.mxu0 0.0
    %1107 = vmatpush1.xpose.msra.mxu0 0.0
    %1108 = vmatprep.subr.mxu0 0.0
    %1109 = vmatpush1.xpose.msra.mxu0 0.0
    %1110 = vmatprep.subr.mxu0 0.0
    %1111 = vmatpush1.xpose.msra.mxu0 0.0
    %1112 = vmatprep.subr.mxu0 0.0
    %1113 = vmatpush1.xpose.msra.mxu0 0.0
    %1114 = vmatprep.subr.mxu0 0.0
    %1115 = vmatpush1.xpose.msra.mxu0 0.0
    %1116 = vmatprep.subr.mxu0 0.0
    %1117 = vmatpush1.xpose.msra.mxu0 0.0
    %1118 = vmatprep.subr.mxu0 0.0
    %1119 = vmatpush1.xpose.msra.mxu0 0.0
    %1120 = vmatprep.subr.mxu0 0.0
    %1121 = vmatpush1.xpose.msra.mxu0 0.0
    %1122 = vmatprep.subr.mxu0 0.0
    %1123 = vmatpush1.xpose.msra.mxu0 0.0
    %1124 = vmatprep.subr.mxu0 0.0
    %1125 = vmatpush1.xpose.msra.mxu0 0.0
    %1126 = vmatprep.subr.mxu0 0.0
    %1127 = vmatpush1.xpose.msra.mxu0 0.0
    %1128 = vmatprep.subr.mxu0 0.0
    %1129 = vmatpush1.xpose.msra.mxu0 0.0
    %1130 = vmatprep.subr.mxu0 0.0
    %1131 = vmatpush1.xpose.msra.mxu0 0.0
    %1132 = vmatprep.subr.mxu0 0.0
    %1133 = vmatpush1.xpose.msra.mxu0 0.0
    %1134 = vmatprep.mubr.f32.mxu0 0.0
    %1135 = vmatmul.mubr.f32.gmra.mrb[0].mxu0 %v1062
    %v1136 = vpop.f32.mrb[0].mxu0
    %v1137 = vadd.f32 %v1046, %v1136
    %v1138 = vpop.f32.mrb[0].mxu0
    %1139 = vmatprep.mubr.f32.mxu0 0.0
    %1140 = vmatmul.mubr.f32.gmra.mrb[0].mxu0 %v1064
    %v1141 = vpop.f32.mrb[0].mxu0
    %v1142 = vadd.f32 %v1051, %v1141
    %v1143 = vpop.f32.mrb[0].mxu0
    %1144 = vdwg.mxu0
    %v1145 = vadd.f32 %v1137, %v257
    %v1146 = vadd.f32 %v1142, %v258
    %v1147 = vsel %vm544, %v1145, -inf
    %1148 = vmax.xlane.f32.xlu0 %v1147
    %v1149 = vpop.xlane.xlu0 %1148
    %v1150 = vsel %vm544, %v1146, -inf
    %1151 = vmax.xlane.f32.xlu0 %v1150
    %v1152 = vpop.xlane.xlu0 %1151
    %v1153 = vsub.f32 %v1145, %v1149
    %v1154 = vsub.f32 %v1146, %v1152
    %v1155 = vmul.f32 %v1153, 1.442695
    %v1156 = vpow.pop %v1155
    %v1157 = vmul.f32 %v1154, 1.442695
    %v1158 = vpow.pop %v1157
    %v1159 = vsel %vm544, %v1156, 0.0
    %1160 = vadd.xlane.f32.xlu0 %v1159
    %v1161 = vpop.xlane.xlu0 %1160
    %v1162 = vsel %vm544, %v1158, 0.0
    %1163 = vadd.xlane.f32.xlu0 %v1162
    %v1164 = vpop.xlane.xlu0 %1163
    %v1165 = vrcp.pop %v1161
    %v1166 = vrcp.pop %v1164
    %v1167 = vmul.f32 %v1156, %v1165
    %v1168 = vmul.f32 %v1158, %v1166
    %1169 = vrot.lane.b32.xlu0 %v245, 48
    %v1170 = vpop.permute.xlu0 %1169
    %1171 = vrot.lane.b32.xlu0 %v250, 48
    %v1172 = vpop.permute.xlu0 %1171
    %v1176 = vsel %vm544, %v1167, 0
    %v1179 = vsel %vm544, %v1168, 0
    %1181 = vmatprep.subr.mxu0 0.0
    %1182 = vmatpush1.msra.mxu0 %v1170
    %1183 = vmatprep.subr.mxu0 0.0
    %1184 = vmatpush1.msra.mxu0 %v1172
    %1185 = vmatprep.subr.mxu0 0.0
    %1186 = vmatpush1.msra.mxu0 0.0
    %1187 = vmatprep.subr.mxu0 0.0
    %1188 = vmatpush1.msra.mxu0 0.0
    %1189 = vmatprep.subr.mxu0 0.0
    %1190 = vmatpush1.msra.mxu0 0.0
    %1191 = vmatprep.subr.mxu0 0.0
    %1192 = vmatpush1.msra.mxu0 0.0
    %1193 = vmatprep.subr.mxu0 0.0
    %1194 = vmatpush1.msra.mxu0 0.0
    %1195 = vmatprep.subr.mxu0 0.0
    %1196 = vmatpush1.msra.mxu0 0.0
    %1197 = vmatprep.subr.mxu0 0.0
    %1198 = vmatpush1.msra.mxu0 0.0
    %1199 = vmatprep.subr.mxu0 0.0
    %1200 = vmatpush1.msra.mxu0 0.0
    %1201 = vmatprep.subr.mxu0 0.0
    %1202 = vmatpush1.msra.mxu0 0.0
    %1203 = vmatprep.subr.mxu0 0.0
    %1204 = vmatpush1.msra.mxu0 0.0
    %1205 = vmatprep.subr.mxu0 0.0
    %1206 = vmatpush1.msra.mxu0 0.0
    %1207 = vmatprep.subr.mxu0 0.0
    %1208 = vmatpush1.msra.mxu0 0.0
    %1209 = vmatprep.subr.mxu0 0.0
    %1210 = vmatpush1.msra.mxu0 0.0
    %1211 = vmatprep.subr.mxu0 0.0
    %1212 = vmatpush1.msra.mxu0 0.0
    %1213 = vmatprep.subr.mxu0 0.0
    %1214 = vmatpush1.msra.mxu0 0.0
    %1215 = vmatprep.subr.mxu0 0.0
    %1216 = vmatpush1.msra.mxu0 0.0
    %1217 = vmatprep.subr.mxu0 0.0
    %1218 = vmatpush1.msra.mxu0 0.0
    %1219 = vmatprep.subr.mxu0 0.0
    %1220 = vmatpush1.msra.mxu0 0.0
    %1221 = vmatprep.subr.mxu0 0.0
    %1222 = vmatpush1.msra.mxu0 0.0
    %1223 = vmatprep.subr.mxu0 0.0
    %1224 = vmatpush1.msra.mxu0 0.0
    %1225 = vmatprep.subr.mxu0 0.0
    %1226 = vmatpush1.msra.mxu0 0.0
    %1227 = vmatprep.subr.mxu0 0.0
    %1228 = vmatpush1.msra.mxu0 0.0
    %1229 = vmatprep.subr.mxu0 0.0
    %1230 = vmatpush1.msra.mxu0 0.0
    %1231 = vmatprep.subr.mxu0 0.0
    %1232 = vmatpush1.msra.mxu0 0.0
    %1233 = vmatprep.subr.mxu0 0.0
    %1234 = vmatpush1.msra.mxu0 0.0
    %1235 = vmatprep.subr.mxu0 0.0
    %1236 = vmatpush1.msra.mxu0 0.0
    %1237 = vmatprep.subr.mxu0 0.0
    %1238 = vmatpush1.msra.mxu0 0.0
    %1239 = vmatprep.subr.mxu0 0.0
    %1240 = vmatpush1.msra.mxu0 0.0
    %1241 = vmatprep.subr.mxu0 0.0
    %1242 = vmatpush1.msra.mxu0 0.0
    %1243 = vmatprep.subr.mxu0 0.0
    %1244 = vmatpush1.msra.mxu0 0.0
    %1245 = vmatprep.mubr.f32.mxu0 0.0
    %1246 = vmatmul.mubr.f32.gmra.mrb[0].mxu0 %v1176
    %v1247 = vpop.f32.mrb[0].mxu0
    %v1248 = vadd.f32 0.0, %v1247
    %v1249 = vpop.f32.mrb[0].mxu0
    %1250 = vmatprep.mubr.f32.mxu0 0.0
    %1251 = vmatmul.mubr.f32.gmra.mrb[0].mxu0 %v1179
    %v1252 = vpop.f32.mrb[0].mxu0
    %v1253 = vadd.f32 0.0, %v1252
    %v1254 = vpop.f32.mrb[0].mxu0
    %1255 = vdwg.mxu0
    %1258 = vrot.lane.b32.xlu0 %v1248, 16
    %v1259 = vpop.permute.xlu0 %1258
    %1260 = vrot.lane.b32.xlu0 %v1253, 16
    %v1261 = vpop.permute.xlu0 %1260
    %vm1264 = vcmask 195712
    %1265 = vst.msk [vmem:[#allocation2] sm:$0xff] %vm1264, %v1259
    %1266 = vst.msk [vmem:[#allocation2 + $0x8] sm:$0xff] %vm1264, %v1261
    %1267 = vrot.lane.b32.xlu0 %v301, 100
    %v1268 = vpop.permute.xlu0 %1267
    %1269 = vrot.lane.b32.xlu0 %v302, 100
    %v1270 = vpop.permute.xlu0 %1269
    %1271 = vrot.lane.b32.xlu0 %v353, 68
    %v1272 = vpop.permute.xlu0 %1271
    %1273 = vrot.lane.b32.xlu0 %v354, 68
    %v1274 = vpop.permute.xlu0 %1273
    %v1275 = vsel %vm367, %v1268, 0
    %v1277 = vsel %vm367, %v1270, 0
    %v1279 = vsel %vm367, %v1272, 0
    %v1281 = vsel %vm367, %v1274, 0
    %1283 = vmatprep.subr.mxu0 0.0
    %1284 = vmatpush1.xpose.msra.mxu0 %v1279
    %1285 = vmatprep.subr.mxu0 0.0
    %1286 = vmatpush1.xpose.msra.mxu0 %v1281
    %1287 = vmatprep.subr.mxu0 0.0
    %1288 = vmatpush1.xpose.msra.mxu0 0.0
    %1289 = vmatprep.subr.mxu0 0.0
    %1290 = vmatpush1.xpose.msra.mxu0 0.0
    %1291 = vmatprep.subr.mxu0 0.0
    %1292 = vmatpush1.xpose.msra.mxu0 0.0
    %1293 = vmatprep.subr.mxu0 0.0
    %1294 = vmatpush1.xpose.msra.mxu0 0.0
    %1295 = vmatprep.subr.mxu0 0.0
    %1296 = vmatpush1.xpose.msra.mxu0 0.0
    %1297 = vmatprep.subr.mxu0 0.0
    %1298 = vmatpush1.xpose.msra.mxu0 0.0
    %1299 = vmatprep.subr.mxu0 0.0
    %1300 = vmatpush1.xpose.msra.mxu0 0.0
    %1301 = vmatprep.subr.mxu0 0.0
    %1302 = vmatpush1.xpose.msra.mxu0 0.0
    %1303 = vmatprep.subr.mxu0 0.0
    %1304 = vmatpush1.xpose.msra.mxu0 0.0
    %1305 = vmatprep.subr.mxu0 0.0
    %1306 = vmatpush1.xpose.msra.mxu0 0.0
    %1307 = vmatprep.subr.mxu0 0.0
    %1308 = vmatpush1.xpose.msra.mxu0 0.0
    %1309 = vmatprep.subr.mxu0 0.0
    %1310 = vmatpush1.xpose.msra.mxu0 0.0
    %1311 = vmatprep.subr.mxu0 0.0
    %1312 = vmatpush1.xpose.msra.mxu0 0.0
    %1313 = vmatprep.subr.mxu0 0.0
    %1314 = vmatpush1.xpose.msra.mxu0 0.0
    %1315 = vmatprep.subr.mxu0 0.0
    %1316 = vmatpush1.xpose.msra.mxu0 0.0
    %1317 = vmatprep.subr.mxu0 0.0
    %1318 = vmatpush1.xpose.msra.mxu0 0.0
    %1319 = vmatprep.subr.mxu0 0.0
    %1320 = vmatpush1.xpose.msra.mxu0 0.0
    %1321 = vmatprep.subr.mxu0 0.0
    %1322 = vmatpush1.xpose.msra.mxu0 0.0
    %1323 = vmatprep.subr.mxu0 0.0
    %1324 = vmatpush1.xpose.msra.mxu0 0.0
    %1325 = vmatprep.subr.mxu0 0.0
    %1326 = vmatpush1.xpose.msra.mxu0 0.0
    %1327 = vmatprep.subr.mxu0 0.0
    %1328 = vmatpush1.xpose.msra.mxu0 0.0
    %1329 = vmatprep.subr.mxu0 0.0
    %1330 = vmatpush1.xpose.msra.mxu0 0.0
    %1331 = vmatprep.subr.mxu0 0.0
    %1332 = vmatpush1.xpose.msra.mxu0 0.0
    %1333 = vmatprep.subr.mxu0 0.0
    %1334 = vmatpush1.xpose.msra.mxu0 0.0
    %1335 = vmatprep.subr.mxu0 0.0
    %1336 = vmatpush1.xpose.msra.mxu0 0.0
    %1337 = vmatprep.subr.mxu0 0.0
    %1338 = vmatpush1.xpose.msra.mxu0 0.0
    %1339 = vmatprep.subr.mxu0 0.0
    %1340 = vmatpush1.xpose.msra.mxu0 0.0
    %1341 = vmatprep.subr.mxu0 0.0
    %1342 = vmatpush1.xpose.msra.mxu0 0.0
    %1343 = vmatprep.subr.mxu0 0.0
    %1344 = vmatpush1.xpose.msra.mxu0 0.0
    %1345 = vmatprep.subr.mxu0 0.0
    %1346 = vmatpush1.xpose.msra.mxu0 0.0
    %1347 = vmatprep.mubr.f32.mxu0 0.0
    %1348 = vmatmul.mubr.f32.gmra.mrb[0].mxu0 %v1275
    %v1349 = vpop.f32.mrb[0].mxu0
    %v1350 = vadd.f32 0.0, %v1349
    %v1351 = vpop.f32.mrb[0].mxu0
    %1352 = vmatprep.mubr.f32.mxu0 0.0
    %1353 = vmatmul.mubr.f32.gmra.mrb[0].mxu0 %v1277
    %v1354 = vpop.f32.mrb[0].mxu0
    %v1355 = vadd.f32 0.0, %v1354
    %v1356 = vpop.f32.mrb[0].mxu0
    %1357 = vdwg.mxu0
    %1358 = vrot.lane.b32.xlu0 %v279, 116
    %v1359 = vpop.permute.xlu0 %1358
    %1360 = vrot.lane.b32.xlu0 %v280, 116
    %v1361 = vpop.permute.xlu0 %1360
    %1362 = vrot.lane.b32.xlu0 %v327, 84
    %v1363 = vpop.permute.xlu0 %1362
    %1364 = vrot.lane.b32.xlu0 %v328, 84
    %v1365 = vpop.permute.xlu0 %1364
    %v1366 = vsel %vm367, %v1359, 0
    %v1368 = vsel %vm367, %v1361, 0
    %v1370 = vsel %vm367, %v1363, 0
    %v1372 = vsel %vm367, %v1365, 0
    %1374 = vmatprep.subr.mxu0 0.0
    %1375 = vmatpush1.xpose.msra.mxu0 %v1370
    %1376 = vmatprep.subr.mxu0 0.0
    %1377 = vmatpush1.xpose.msra.mxu0 %v1372
    %1378 = vmatprep.subr.mxu0 0.0
    %1379 = vmatpush1.xpose.msra.mxu0 0.0
    %1380 = vmatprep.subr.mxu0 0.0
    %1381 = vmatpush1.xpose.msra.mxu0 0.0
    %1382 = vmatprep.subr.mxu0 0.0
    %1383 = vmatpush1.xpose.msra.mxu0 0.0
    %1384 = vmatprep.subr.mxu0 0.0
    %1385 = vmatpush1.xpose.msra.mxu0 0.0
    %1386 = vmatprep.subr.mxu0 0.0
    %1387 = vmatpush1.xpose.msra.mxu0 0.0
    %1388 = vmatprep.subr.mxu0 0.0
    %1389 = vmatpush1.xpose.msra.mxu0 0.0
    %1390 = vmatprep.subr.mxu0 0.0
    %1391 = vmatpush1.xpose.msra.mxu0 0.0
    %1392 = vmatprep.subr.mxu0 0.0
    %1393 = vmatpush1.xpose.msra.mxu0 0.0
    %1394 = vmatprep.subr.mxu0 0.0
    %1395 = vmatpush1.xpose.msra.mxu0 0.0
    %1396 = vmatprep.subr.mxu0 0.0
    %1397 = vmatpush1.xpose.msra.mxu0 0.0
    %1398 = vmatprep.subr.mxu0 0.0
    %1399 = vmatpush1.xpose.msra.mxu0 0.0
    %1400 = vmatprep.subr.mxu0 0.0
    %1401 = vmatpush1.xpose.msra.mxu0 0.0
    %1402 = vmatprep.subr.mxu0 0.0
    %1403 = vmatpush1.xpose.msra.mxu0 0.0
    %1404 = vmatprep.subr.mxu0 0.0
    %1405 = vmatpush1.xpose.msra.mxu0 0.0
    %1406 = vmatprep.subr.mxu0 0.0
    %1407 = vmatpush1.xpose.msra.mxu0 0.0
    %1408 = vmatprep.subr.mxu0 0.0
    %1409 = vmatpush1.xpose.msra.mxu0 0.0
    %1410 = vmatprep.subr.mxu0 0.0
    %1411 = vmatpush1.xpose.msra.mxu0 0.0
    %1412 = vmatprep.subr.mxu0 0.0
    %1413 = vmatpush1.xpose.msra.mxu0 0.0
    %1414 = vmatprep.subr.mxu0 0.0
    %1415 = vmatpush1.xpose.msra.mxu0 0.0
    %1416 = vmatprep.subr.mxu0 0.0
    %1417 = vmatpush1.xpose.msra.mxu0 0.0
    %1418 = vmatprep.subr.mxu0 0.0
    %1419 = vmatpush1.xpose.msra.mxu0 0.0
    %1420 = vmatprep.subr.mxu0 0.0
    %1421 = vmatpush1.xpose.msra.mxu0 0.0
    %1422 = vmatprep.subr.mxu0 0.0
    %1423 = vmatpush1.xpose.msra.mxu0 0.0
    %1424 = vmatprep.subr.mxu0 0.0
    %1425 = vmatpush1.xpose.msra.mxu0 0.0
    %1426 = vmatprep.subr.mxu0 0.0
    %1427 = vmatpush1.xpose.msra.mxu0 0.0
    %1428 = vmatprep.subr.mxu0 0.0
    %1429 = vmatpush1.xpose.msra.mxu0 0.0
    %1430 = vmatprep.subr.mxu0 0.0
    %1431 = vmatpush1.xpose.msra.mxu0 0.0
    %1432 = vmatprep.subr.mxu0 0.0
    %1433 = vmatpush1.xpose.msra.mxu0 0.0
    %1434 = vmatprep.subr.mxu0 0.0
    %1435 = vmatpush1.xpose.msra.mxu0 0.0
    %1436 = vmatprep.subr.mxu0 0.0
    %1437 = vmatpush1.xpose.msra.mxu0 0.0
    %1438 = vmatprep.mubr.f32.mxu0 0.0
    %1439 = vmatmul.mubr.f32.gmra.mrb[0].mxu0 %v1366
    %v1440 = vpop.f32.mrb[0].mxu0
    %v1441 = vadd.f32 %v1350, %v1440
    %v1442 = vpop.f32.mrb[0].mxu0
    %1443 = vmatprep.mubr.f32.mxu0 0.0
    %1444 = vmatmul.mubr.f32.gmra.mrb[0].mxu0 %v1368
    %v1445 = vpop.f32.mrb[0].mxu0
    %v1446 = vadd.f32 %v1355, %v1445
    %v1447 = vpop.f32.mrb[0].mxu0
    %1448 = vdwg.mxu0
    %v1449 = vadd.f32 %v1441, %v257
    %v1450 = vadd.f32 %v1446, %v258
    %v1451 = vsel %vm544, %v1449, -inf
    %1452 = vmax.xlane.f32.xlu0 %v1451
    %v1453 = vpop.xlane.xlu0 %1452
    %v1454 = vsel %vm544, %v1450, -inf
    %1455 = vmax.xlane.f32.xlu0 %v1454
    %v1456 = vpop.xlane.xlu0 %1455
    %v1457 = vsub.f32 %v1449, %v1453
    %v1458 = vsub.f32 %v1450, %v1456
    %v1459 = vmul.f32 %v1457, 1.442695
    %v1460 = vpow.pop %v1459
    %v1461 = vmul.f32 %v1458, 1.442695
    %v1462 = vpow.pop %v1461
    %v1463 = vsel %vm544, %v1460, 0.0
    %1464 = vadd.xlane.f32.xlu0 %v1463
    %v1465 = vpop.xlane.xlu0 %1464
    %v1466 = vsel %vm544, %v1462, 0.0
    %1467 = vadd.xlane.f32.xlu0 %v1466
    %v1468 = vpop.xlane.xlu0 %1467
    %v1469 = vrcp.pop %v1465
    %v1470 = vrcp.pop %v1468
    %v1471 = vmul.f32 %v1460, %v1469
    %v1472 = vmul.f32 %v1462, %v1470
    %1473 = vrot.lane.b32.xlu0 %v245, 40
    %v1474 = vpop.permute.xlu0 %1473
    %1475 = vrot.lane.b32.xlu0 %v250, 40
    %v1476 = vpop.permute.xlu0 %1475
    %v1480 = vsel %vm544, %v1471, 0
    %v1483 = vsel %vm544, %v1472, 0
    %1485 = vmatprep.subr.mxu0 0.0
    %1486 = vmatpush1.msra.mxu0 %v1474
    %1487 = vmatprep.subr.mxu0 0.0
    %1488 = vmatpush1.msra.mxu0 %v1476
    %1489 = vmatprep.subr.mxu0 0.0
    %1490 = vmatpush1.msra.mxu0 0.0
    %1491 = vmatprep.subr.mxu0 0.0
    %1492 = vmatpush1.msra.mxu0 0.0
    %1493 = vmatprep.subr.mxu0 0.0
    %1494 = vmatpush1.msra.mxu0 0.0
    %1495 = vmatprep.subr.mxu0 0.0
    %1496 = vmatpush1.msra.mxu0 0.0
    %1497 = vmatprep.subr.mxu0 0.0
    %1498 = vmatpush1.msra.mxu0 0.0
    %1499 = vmatprep.subr.mxu0 0.0
    %1500 = vmatpush1.msra.mxu0 0.0
    %1501 = vmatprep.subr.mxu0 0.0
    %1502 = vmatpush1.msra.mxu0 0.0
    %1503 = vmatprep.subr.mxu0 0.0
    %1504 = vmatpush1.msra.mxu0 0.0
    %1505 = vmatprep.subr.mxu0 0.0
    %1506 = vmatpush1.msra.mxu0 0.0
    %1507 = vmatprep.subr.mxu0 0.0
    %1508 = vmatpush1.msra.mxu0 0.0
    %1509 = vmatprep.subr.mxu0 0.0
    %1510 = vmatpush1.msra.mxu0 0.0
    %1511 = vmatprep.subr.mxu0 0.0
    %1512 = vmatpush1.msra.mxu0 0.0
    %1513 = vmatprep.subr.mxu0 0.0
    %1514 = vmatpush1.msra.mxu0 0.0
    %1515 = vmatprep.subr.mxu0 0.0
    %1516 = vmatpush1.msra.mxu0 0.0
    %1517 = vmatprep.subr.mxu0 0.0
    %1518 = vmatpush1.msra.mxu0 0.0
    %1519 = vmatprep.subr.mxu0 0.0
    %1520 = vmatpush1.msra.mxu0 0.0
    %1521 = vmatprep.subr.mxu0 0.0
    %1522 = vmatpush1.msra.mxu0 0.0
    %1523 = vmatprep.subr.mxu0 0.0
    %1524 = vmatpush1.msra.mxu0 0.0
    %1525 = vmatprep.subr.mxu0 0.0
    %1526 = vmatpush1.msra.mxu0 0.0
    %1527 = vmatprep.subr.mxu0 0.0
    %1528 = vmatpush1.msra.mxu0 0.0
    %1529 = vmatprep.subr.mxu0 0.0
    %1530 = vmatpush1.msra.mxu0 0.0
    %1531 = vmatprep.subr.mxu0 0.0
    %1532 = vmatpush1.msra.mxu0 0.0
    %1533 = vmatprep.subr.mxu0 0.0
    %1534 = vmatpush1.msra.mxu0 0.0
    %1535 = vmatprep.subr.mxu0 0.0
    %1536 = vmatpush1.msra.mxu0 0.0
    %1537 = vmatprep.subr.mxu0 0.0
    %1538 = vmatpush1.msra.mxu0 0.0
    %1539 = vmatprep.subr.mxu0 0.0
    %1540 = vmatpush1.msra.mxu0 0.0
    %1541 = vmatprep.subr.mxu0 0.0
    %1542 = vmatpush1.msra.mxu0 0.0
    %1543 = vmatprep.subr.mxu0 0.0
    %1544 = vmatpush1.msra.mxu0 0.0
    %1545 = vmatprep.subr.mxu0 0.0
    %1546 = vmatpush1.msra.mxu0 0.0
    %1547 = vmatprep.subr.mxu0 0.0
    %1548 = vmatpush1.msra.mxu0 0.0
    %1549 = vmatprep.mubr.f32.mxu0 0.0
    %1550 = vmatmul.mubr.f32.gmra.mrb[0].mxu0 %v1480
    %v1551 = vpop.f32.mrb[0].mxu0
    %v1552 = vadd.f32 0.0, %v1551
    %v1553 = vpop.f32.mrb[0].mxu0
    %1554 = vmatprep.mubr.f32.mxu0 0.0
    %1555 = vmatmul.mubr.f32.gmra.mrb[0].mxu0 %v1483
    %v1556 = vpop.f32.mrb[0].mxu0
    %v1557 = vadd.f32 0.0, %v1556
    %v1558 = vpop.f32.mrb[0].mxu0
    %1559 = vdwg.mxu0
    %1562 = vrot.lane.b32.xlu0 %v1552, 24
    %v1563 = vpop.permute.xlu0 %1562
    %1564 = vrot.lane.b32.xlu0 %v1557, 24
    %v1565 = vpop.permute.xlu0 %1564
    %vm1568 = vcmask 261312
    %1569 = vst.msk [vmem:[#allocation2] sm:$0xff] %vm1568, %v1563
    %1570 = vst.msk [vmem:[#allocation2 + $0x8] sm:$0xff] %vm1568, %v1565
    %v1571 = vld [vmem:[#allocation2] sm:$0xff]
    %v1572 = vld [vmem:[#allocation2 + $0x8] sm:$0xff]
    %v1573 = vld [vmem:[#allocation8] sm:$0xff]
    %v1574 = vld [vmem:[#allocation8 + $0x8] sm:$0xff]
    %v1575 = vld [vmem:[#allocation8 + $0x10] sm:$0xff]
    %v1576 = vld [vmem:[#allocation8 + $0x18] sm:$0xff]
    %v1578 = vsel %vm136, %v1571, 0
    %v1581 = vsel %vm136, %v1572, 0
    %1583 = vmatprep.subr.mxu0 0.0
    %1584 = vmatpush1.msra.mxu0 %v1573
    %1585 = vmatprep.subr.mxu0 0.0
    %1586 = vmatpush1.msra.mxu0 %v1574
    %1587 = vmatprep.subr.mxu0 0.0
    %1588 = vmatpush1.msra.mxu0 %v1575
    %1589 = vmatprep.subr.mxu0 0.0
    %1590 = vmatpush1.msra.mxu0 %v1576
    %1591 = vmatprep.subr.mxu0 0.0
    %1592 = vmatpush1.msra.mxu0 0.0
    %1593 = vmatprep.subr.mxu0 0.0
    %1594 = vmatpush1.msra.mxu0 0.0
    %1595 = vmatprep.subr.mxu0 0.0
    %1596 = vmatpush1.msra.mxu0 0.0
    %1597 = vmatprep.subr.mxu0 0.0
    %1598 = vmatpush1.msra.mxu0 0.0
    %1599 = vmatprep.subr.mxu0 0.0
    %1600 = vmatpush1.msra.mxu0 0.0
    %1601 = vmatprep.subr.mxu0 0.0
    %1602 = vmatpush1.msra.mxu0 0.0
    %1603 = vmatprep.subr.mxu0 0.0
    %1604 = vmatpush1.msra.mxu0 0.0
    %1605 = vmatprep.subr.mxu0 0.0
    %1606 = vmatpush1.msra.mxu0 0.0
    %1607 = vmatprep.subr.mxu0 0.0
    %1608 = vmatpush1.msra.mxu0 0.0
    %1609 = vmatprep.subr.mxu0 0.0
    %1610 = vmatpush1.msra.mxu0 0.0
    %1611 = vmatprep.subr.mxu0 0.0
    %1612 = vmatpush1.msra.mxu0 0.0
    %1613 = vmatprep.subr.mxu0 0.0
    %1614 = vmatpush1.msra.mxu0 0.0
    %1615 = vmatprep.subr.mxu0 0.0
    %1616 = vmatpush1.msra.mxu0 0.0
    %1617 = vmatprep.subr.mxu0 0.0
    %1618 = vmatpush1.msra.mxu0 0.0
    %1619 = vmatprep.subr.mxu0 0.0
    %1620 = vmatpush1.msra.mxu0 0.0
    %1621 = vmatprep.subr.mxu0 0.0
    %1622 = vmatpush1.msra.mxu0 0.0
    %1623 = vmatprep.subr.mxu0 0.0
    %1624 = vmatpush1.msra.mxu0 0.0
    %1625 = vmatprep.subr.mxu0 0.0
    %1626 = vmatpush1.msra.mxu0 0.0
    %1627 = vmatprep.subr.mxu0 0.0
    %1628 = vmatpush1.msra.mxu0 0.0
    %1629 = vmatprep.subr.mxu0 0.0
    %1630 = vmatpush1.msra.mxu0 0.0
    %1631 = vmatprep.subr.mxu0 0.0
    %1632 = vmatpush1.msra.mxu0 0.0
    %1633 = vmatprep.subr.mxu0 0.0
    %1634 = vmatpush1.msra.mxu0 0.0
    %1635 = vmatprep.subr.mxu0 0.0
    %1636 = vmatpush1.msra.mxu0 0.0
    %1637 = vmatprep.subr.mxu0 0.0
    %1638 = vmatpush1.msra.mxu0 0.0
    %1639 = vmatprep.subr.mxu0 0.0
    %1640 = vmatpush1.msra.mxu0 0.0
    %1641 = vmatprep.subr.mxu0 0.0
    %1642 = vmatpush1.msra.mxu0 0.0
    %1643 = vmatprep.subr.mxu0 0.0
    %1644 = vmatpush1.msra.mxu0 0.0
    %1645 = vmatprep.subr.mxu0 0.0
    %1646 = vmatpush1.msra.mxu0 0.0
    %1647 = vmatprep.mubr.f32.mxu0 0.0
    %1648 = vmatmul.mubr.f32.gmra.mrb[0].mxu0 %v1578
    %v1649 = vpop.f32.mrb[0].mxu0
    %v1650 = vadd.f32 0.0, %v1649
    %v1651 = vpop.f32.mrb[0].mxu0
    %1652 = vmatprep.mubr.f32.mxu0 0.0
    %1653 = vmatmul.mubr.f32.gmra.mrb[0].mxu0 %v1581
    %v1654 = vpop.f32.mrb[0].mxu0
    %v1655 = vadd.f32 0.0, %v1654
    %v1656 = vpop.f32.mrb[0].mxu0
    %1657 = vdwg.mxu0
    %v1658 = vadd.f32 %v132, %v1650
    %v1659 = vadd.f32 %v133, %v1655
    %v1660 = vmul.f32 %v1658, %v1658
    %v1661 = vmul.f32 %v1659, %v1659
    %v1662 = vsel %vm136, %v1660, 0.0
    %1663 = vadd.xlane.f32.xlu0 %v1662
    %v1664 = vpop.xlane.xlu0 %1663
    %v1665 = vsel %vm136, %v1661, 0.0
    %1666 = vadd.xlane.f32.xlu0 %v1665
    %v1667 = vpop.xlane.xlu0 %1666
    %v1668 = vmul.f32 %v1664, %v143
    %v1669 = vmul.f32 %v1667, %v143
    %v1670 = vadd.f32 %v1668, 1e-06
    %v1671 = vadd.f32 %v1669, 1e-06
    %v1672 = vrsqrt.pop %v1670
    %v1673 = vrsqrt.pop %v1671
    %v1674 = vmul.f32 %v1658, %v1672
    %v1675 = vmul.f32 %v1659, %v1673
    %v1676 = vld [vmem:[#allocation9] sm:$0x1]
    %v1678 = vlaneseq
    %v1679 = vshrl.u32 %v1678, 7
    %v1680 = vsub.s32 0, %v1679
    %v1681 = vrot.slane %v1676, %v1680
    %v1683 = vmul.f32 %v1674, %v1681
    %v1684 = vmul.f32 %v1675, %v1681
    %v1685 = vld [vmem:[#allocation11] sm:$0xff]
    %v1686 = vld [vmem:[#allocation11 + $0x8] sm:$0xff]
    %v1687 = vld [vmem:[#allocation11 + $0x10] sm:$0xff]
    %v1688 = vld [vmem:[#allocation11 + $0x18] sm:$0xff]
    %v1690 = vsel %vm136, %v1683, 0
    %v1693 = vsel %vm136, %v1684, 0
    %1695 = vmatprep.subr.mxu0 0.0
    %1696 = vmatpush1.msra.mxu0 %v1685
    %1697 = vmatprep.subr.mxu0 0.0
    %1698 = vmatpush1.msra.mxu0 %v1686
    %1699 = vmatprep.subr.mxu0 0.0
    %1700 = vmatpush1.msra.mxu0 %v1687
    %1701 = vmatprep.subr.mxu0 0.0
    %1702 = vmatpush1.msra.mxu0 %v1688
    %1703 = vmatprep.subr.mxu0 0.0
    %1704 = vmatpush1.msra.mxu0 0.0
    %1705 = vmatprep.subr.mxu0 0.0
    %1706 = vmatpush1.msra.mxu0 0.0
    %1707 = vmatprep.subr.mxu0 0.0
    %1708 = vmatpush1.msra.mxu0 0.0
    %1709 = vmatprep.subr.mxu0 0.0
    %1710 = vmatpush1.msra.mxu0 0.0
    %1711 = vmatprep.subr.mxu0 0.0
    %1712 = vmatpush1.msra.mxu0 0.0
    %1713 = vmatprep.subr.mxu0 0.0
    %1714 = vmatpush1.msra.mxu0 0.0
    %1715 = vmatprep.subr.mxu0 0.0
    %1716 = vmatpush1.msra.mxu0 0.0
    %1717 = vmatprep.subr.mxu0 0.0
    %1718 = vmatpush1.msra.mxu0 0.0
    %1719 = vmatprep.subr.mxu0 0.0
    %1720 = vmatpush1.msra.mxu0 0.0
    %1721 = vmatprep.subr.mxu0 0.0
    %1722 = vmatpush1.msra.mxu0 0.0
    %1723 = vmatprep.subr.mxu0 0.0
    %1724 = vmatpush1.msra.mxu0 0.0
    %1725 = vmatprep.subr.mxu0 0.0
    %1726 = vmatpush1.msra.mxu0 0.0
    %1727 = vmatprep.subr.mxu0 0.0
    %1728 = vmatpush1.msra.mxu0 0.0
    %1729 = vmatprep.subr.mxu0 0.0
    %1730 = vmatpush1.msra.mxu0 0.0
    %1731 = vmatprep.subr.mxu0 0.0
    %1732 = vmatpush1.msra.mxu0 0.0
    %1733 = vmatprep.subr.mxu0 0.0
    %1734 = vmatpush1.msra.mxu0 0.0
    %1735 = vmatprep.subr.mxu0 0.0
    %1736 = vmatpush1.msra.mxu0 0.0
    %1737 = vmatprep.subr.mxu0 0.0
    %1738 = vmatpush1.msra.mxu0 0.0
    %1739 = vmatprep.subr.mxu0 0.0
    %1740 = vmatpush1.msra.mxu0 0.0
    %1741 = vmatprep.subr.mxu0 0.0
    %1742 = vmatpush1.msra.mxu0 0.0
    %1743 = vmatprep.subr.mxu0 0.0
    %1744 = vmatpush1.msra.mxu0 0.0
    %1745 = vmatprep.subr.mxu0 0.0
    %1746 = vmatpush1.msra.mxu0 0.0
    %1747 = vmatprep.subr.mxu0 0.0
    %1748 = vmatpush1.msra.mxu0 0.0
    %1749 = vmatprep.subr.mxu0 0.0
    %1750 = vmatpush1.msra.mxu0 0.0
    %1751 = vmatprep.subr.mxu0 0.0
    %1752 = vmatpush1.msra.mxu0 0.0
    %1753 = vmatprep.subr.mxu0 0.0
    %1754 = vmatpush1.msra.mxu0 0.0
    %1755 = vmatprep.subr.mxu0 0.0
    %1756 = vmatpush1.msra.mxu0 0.0
    %1757 = vmatprep.subr.mxu0 0.0
    %1758 = vmatpush1.msra.mxu0 0.0
    %1759 = vmatprep.mubr.f32.mxu0 0.0
    %1760 = vmatmul.mubr.f32.gmra.mrb[0].mxu0 %v1690
    %v1761 = vpop.f32.mrb[0].mxu0
    %v1762 = vadd.f32 0.0, %v1761
    %v1763 = vpop.f32.mrb[0].mxu0
    %1764 = vmatprep.mubr.f32.mxu0 0.0
    %1765 = vmatmul.mubr.f32.gmra.mrb[0].mxu0 %v1693
    %v1766 = vpop.f32.mrb[0].mxu0
    %v1767 = vadd.f32 0.0, %v1766
    %v1768 = vpop.f32.mrb[0].mxu0
    %1769 = vdwg.mxu0
    %v1770 = vxor.u32 %v1762, 2147483648
    %v1771 = vxor.u32 %v1767, 2147483648
    %v1772 = vmul.f32 %v1770, 1.442695
    %v1773 = vpow.pop %v1772
    %v1774 = vmul.f32 %v1771, 1.442695
    %v1775 = vpow.pop %v1774
    %v1776 = vadd.f32 %v1773, 1.0
    %v1777 = vadd.f32 %v1775, 1.0
    %v1778 = vrcp.pop %v1776
    %v1779 = vmul.f32 1.0, %v1778
    %v1780 = vrcp.pop %v1777
    %v1781 = vmul.f32 1.0, %v1780
    %v1782 = vmul.f32 %v1762, %v1779
    %v1783 = vmul.f32 %v1767, %v1781
    %1786 = vrot.lane.b32.xlu0 %v1782, 96
    %v1787 = vpop.permute.xlu0 %1786
    %1788 = vrot.lane.b32.xlu0 %v1783, 96
    %v1789 = vpop.permute.xlu0 %1788
    %v1792 = vmul.f32 %v1762, %v1787
    %v1793 = vmul.f32 %v1767, %v1789
    %v1794 = vld [vmem:[#allocation12] sm:$0xff]
    %v1795 = vld [vmem:[#allocation12 + $0x8] sm:$0xff]
    %v1796 = vld [vmem:[#allocation12 + $0x10] sm:$0xff]
    %v1797 = vld [vmem:[#allocation12 + $0x18] sm:$0xff]
    %v1799 = vsel %vm136, %v1792, 0
    %v1802 = vsel %vm136, %v1793, 0
    %1804 = vmatprep.subr.mxu0 0.0
    %1805 = vmatpush1.msra.mxu0 %v1794
    %1806 = vmatprep.subr.mxu0 0.0
    %1807 = vmatpush1.msra.mxu0 %v1795
    %1808 = vmatprep.subr.mxu0 0.0
    %1809 = vmatpush1.msra.mxu0 %v1796
    %1810 = vmatprep.subr.mxu0 0.0
    %1811 = vmatpush1.msra.mxu0 %v1797
    %1812 = vmatprep.subr.mxu0 0.0
    %1813 = vmatpush1.msra.mxu0 0.0
    %1814 = vmatprep.subr.mxu0 0.0
    %1815 = vmatpush1.msra.mxu0 0.0
    %1816 = vmatprep.subr.mxu0 0.0
    %1817 = vmatpush1.msra.mxu0 0.0
    %1818 = vmatprep.subr.mxu0 0.0
    %1819 = vmatpush1.msra.mxu0 0.0
    %1820 = vmatprep.subr.mxu0 0.0
    %1821 = vmatpush1.msra.mxu0 0.0
    %1822 = vmatprep.subr.mxu0 0.0
    %1823 = vmatpush1.msra.mxu0 0.0
    %1824 = vmatprep.subr.mxu0 0.0
    %1825 = vmatpush1.msra.mxu0 0.0
    %1826 = vmatprep.subr.mxu0 0.0
    %1827 = vmatpush1.msra.mxu0 0.0
    %1828 = vmatprep.subr.mxu0 0.0
    %1829 = vmatpush1.msra.mxu0 0.0
    %1830 = vmatprep.subr.mxu0 0.0
    %1831 = vmatpush1.msra.mxu0 0.0
    %1832 = vmatprep.subr.mxu0 0.0
    %1833 = vmatpush1.msra.mxu0 0.0
    %1834 = vmatprep.subr.mxu0 0.0
    %1835 = vmatpush1.msra.mxu0 0.0
    %1836 = vmatprep.subr.mxu0 0.0
    %1837 = vmatpush1.msra.mxu0 0.0
    %1838 = vmatprep.subr.mxu0 0.0
    %1839 = vmatpush1.msra.mxu0 0.0
    %1840 = vmatprep.subr.mxu0 0.0
    %1841 = vmatpush1.msra.mxu0 0.0
    %1842 = vmatprep.subr.mxu0 0.0
    %1843 = vmatpush1.msra.mxu0 0.0
    %1844 = vmatprep.subr.mxu0 0.0
    %1845 = vmatpush1.msra.mxu0 0.0
    %1846 = vmatprep.subr.mxu0 0.0
    %1847 = vmatpush1.msra.mxu0 0.0
    %1848 = vmatprep.subr.mxu0 0.0
    %1849 = vmatpush1.msra.mxu0 0.0
    %1850 = vmatprep.subr.mxu0 0.0
    %1851 = vmatpush1.msra.mxu0 0.0
    %1852 = vmatprep.subr.mxu0 0.0
    %1853 = vmatpush1.msra.mxu0 0.0
    %1854 = vmatprep.subr.mxu0 0.0
    %1855 = vmatpush1.msra.mxu0 0.0
    %1856 = vmatprep.subr.mxu0 0.0
    %1857 = vmatpush1.msra.mxu0 0.0
    %1858 = vmatprep.subr.mxu0 0.0
    %1859 = vmatpush1.msra.mxu0 0.0
    %1860 = vmatprep.subr.mxu0 0.0
    %1861 = vmatpush1.msra.mxu0 0.0
    %1862 = vmatprep.subr.mxu0 0.0
    %1863 = vmatpush1.msra.mxu0 0.0
    %1864 = vmatprep.subr.mxu0 0.0
    %1865 = vmatpush1.msra.mxu0 0.0
    %1866 = vmatprep.subr.mxu0 0.0
    %1867 = vmatpush1.msra.mxu0 0.0
    %1868 = vmatprep.mubr.f32.mxu0 0.0
    %1869 = vmatmul.mubr.f32.gmra.mrb[0].mxu0 %v1799
    %v1870 = vpop.f32.mrb[0].mxu0
    %v1871 = vadd.f32 0.0, %v1870
    %v1872 = vpop.f32.mrb[0].mxu0
    %1873 = vmatprep.mubr.f32.mxu0 0.0
    %1874 = vmatmul.mubr.f32.gmra.mrb[0].mxu0 %v1802
    %v1875 = vpop.f32.mrb[0].mxu0
    %v1876 = vadd.f32 0.0, %v1875
    %v1877 = vpop.f32.mrb[0].mxu0
    %1878 = vdwg.mxu0
    %v1879 = vadd.f32 %v1658, %v1871
    %v1880 = vadd.f32 %v1659, %v1876
    %1881 = vst.msk [vmem:[#allocation15] sm:$0xff] %vm136, %v1879
    %1882 = vst.msk [vmem:[#allocation15 + $0x8] sm:$0xff] %vm136, %v1880
    // Predicated region
    $region74: #{tpu_custom_call.1} parent=1 // pred_check
      _
    $region75: #{tpu_custom_call.1} parent=1 // pred_check_branch
      %1884 = sbr.rel (0) target = $region77
    $region76: #{tpu_custom_call.1} parent=1 // pred_region
      %s1886 = ssub.s32 256, 256
      %1887 = vsyncadd [#allocation5], %s1886
      %s1888 = sshll.u32 [#allocation15], 4
      %s1889 = int_to_ptr.vmem [resolvable:$true] %s1888
      %1894 = dma.vmem_to_hbm [thread:$0]  %s1889, 256, %s11, [#allocation5], 128, 128, 8
    $region77: #{tpu_custom_call.1} parent=1 // pred_fallthru
      _
    // Predicated region
    $region78: #{tpu_custom_call.1} parent=1 // pred_check
      _
    $region79: #{tpu_custom_call.1} parent=1 // pred_check_branch
      %1896 = sbr.rel (0) target = $region81
    $region80: #{tpu_custom_call.1} parent=1 // pred_region
      %1897 = dma.done [#allocation5], 256
    $region81: #{tpu_custom_call.1} parent=1 // pred_fallthru
      _
    %1898 = vsyncpa [#allocation4], 1
    %1899 = vsyncpa [#allocation7], 1
    %1900 = vsyncpa [#allocation10], 1
    %1901 = vsyncpa [#allocation13], 1
    %1902 = vsyncpa [#allocation5], 1

</llo_original>
